<compile_context>
chip_gen: v7x
topology: tpu7x:2x2x1
jax: 0.10.0
libtpu: 0.0.40
codegen_flags: <defaults>
</compile_context>

<pallas_src>
import functools

import jax
import jax.numpy as jnp
from jax.experimental import pallas as pl
from jax.experimental.pallas import tpu as pltpu


def _round_up(x, m):
    return (x + m - 1) // m * m


# Fixed tile caps: bounded VMEM (fits v7x's 64 MiB easily), lane-dense (>=128) N tiles,
# 256-granular K/N for the 2x256^2 MXU on v6e/v7x (also a multiple of 128 for v5e).
_TM, _TN, _TK = 512, 256, 256


# -----------------------------------------------------------------------------
# Pallas kernels
# -----------------------------------------------------------------------------
def _mm_bn_kernel(a_ref, b_ref, s_ref, t_ref, o_ref, *scratch, relu, nk):
    """o = act(scale * (a @ b) + bias); f32 accumulation in VMEM scratch, bf16 out."""
    if nk == 1:  # single K tile: no scratch round-trip, write the epilogue directly
        y = jnp.dot(a_ref[...], b_ref[...], preferred_element_type=jnp.float32)
        y = y * s_ref[...] + t_ref[...]
        if relu:
            y = jnp.maximum(y, 0.0)
        o_ref[...] = y.astype(o_ref.dtype)
        return

    acc_ref = scratch[0]
    k = pl.program_id(2)

    @pl.when(k == 0)
    def _():
        acc_ref[...] = jnp.zeros_like(acc_ref)

    acc_ref[...] += jnp.dot(a_ref[...], b_ref[...],
                            preferred_element_type=jnp.float32)

    @pl.when(k == nk - 1)
    def _():
        y = acc_ref[...] * s_ref[...] + t_ref[...]
        if relu:
            y = jnp.maximum(y, 0.0)
        o_ref[...] = y.astype(o_ref.dtype)


def _mm_bn_res_kernel(a_ref, b_ref, s_ref, t_ref, r_ref, o_ref, *scratch, nk):
    """o = relu(scale * (a @ b) + bias + residual) — last conv of a bottleneck."""
    if nk == 1:
        y = jnp.dot(a_ref[...], b_ref[...], preferred_element_type=jnp.float32)
        y = y * s_ref[...] + t_ref[...] + r_ref[...].astype(jnp.float32)
        o_ref[...] = jnp.maximum(y, 0.0).astype(o_ref.dtype)
        return

    acc_ref = scratch[0]
    k = pl.program_id(2)

    @pl.when(k == 0)
    def _():
        acc_ref[...] = jnp.zeros_like(acc_ref)

    acc_ref[...] += jnp.dot(a_ref[...], b_ref[...],
                            preferred_element_type=jnp.float32)

    @pl.when(k == nk - 1)
    def _():
        y = acc_ref[...] * s_ref[...] + t_ref[...] + r_ref[...].astype(jnp.float32)
        o_ref[...] = jnp.maximum(y, 0.0).astype(o_ref.dtype)


def _conv3x3_kernel(lo_ref, hi_ref, w_ref, s_ref, t_ref, o_ref, xs_ref, acc_ref,
                    *, tap_offs, nk):
    """Direct (im2col-free) stride-1 3x3 conv tile + fused BN + ReLU epilogue.

    lo is a (tm, tk) row block of the flattened padded activation, hi is its small
    (h, tk) halo; both are staged contiguously into the bf16 VMEM scratch xs once,
    so every tap is a plain shifted VMEM read feeding an MXU dot (no SSA concat,
    no per-tap casts)."""
    tm = o_ref.shape[0]
    k = pl.program_id(2)

    @pl.when(k == 0)
    def _():
        acc_ref[...] = jnp.zeros_like(acc_ref)

    xs_ref[pl.ds(0, tm), :] = lo_ref[...]
    xs_ref[pl.ds(tm, hi_ref.shape[0]), :] = hi_ref[...]

    for tap, off in enumerate(tap_offs):            # 9 unrolled MXU dots
        acc_ref[...] += jnp.dot(xs_ref[pl.ds(off, tm), :], w_ref[tap],
                                preferred_element_type=jnp.float32)

    @pl.when(k == nk - 1)
    def _():
        y = acc_ref[...] * s_ref[...] + t_ref[...]
        o_ref[...] = jnp.maximum(y, 0.0).astype(o_ref.dtype)


def _max9_kernel(x0, x1, x2, x3, x4, x5, x6, x7, x8, o_ref):
    m = x0[...]
    for r in (x1, x2, x3, x4, x5, x6, x7, x8):
        m = jnp.maximum(m, r[...])
    o_ref[...] = m


# -----------------------------------------------------------------------------
# Fused conv wrappers
# -----------------------------------------------------------------------------
@functools.partial(jax.jit, static_argnames=("relu",))
def matmul_bn(a, b, scale, bias, residual=None, *, relu=True):
    """act(BN(a @ b) [+ residual]); bf16 in / bf16 out, f32 accumulation."""
    M, K = a.shape
    _, N = b.shape
    tm = min(_TM, _round_up(M, 8))
    tn = min(_TN, _round_up(N, 128))
    tk = min(_TK, _round_up(K, 128))
    Mp, Kp, Np = _round_up(M, tm), _round_up(K, tk), _round_up(N, tn)

    # Keep >= 2 blocks in the parallel (M, N) grid when cheap (v7x has 2 TCs/chip).
    if Mp // tm == 1 and Np // tn == 1:
        if Np >= 256:
            tn = 128
        elif Mp >= 32:
            tm = _round_up(Mp // 2, 16)
            Mp = _round_up(M, tm)

    a = a.astype(jnp.bfloat16)
    if (M, K) != (Mp, Kp):
        a = jnp.pad(a, ((0, Mp - M), (0, Kp - K)))
    b = b.astype(jnp.bfloat16)
    if (K, N) != (Kp, Np):
        b = jnp.pad(b, ((0, Kp - K), (0, Np - N)))
    s = scale.astype(jnp.float32)
    t = bias.astype(jnp.float32)
    if N != Np:
        s = jnp.pad(s, (0, Np - N))
        t = jnp.pad(t, (0, Np - N))
    s = s.reshape(1, Np)
    t = t.reshape(1, Np)

    nk = Kp // tk
    in_specs = [
        pl.BlockSpec((tm, tk), lambda i, j, k: (i, k)),
        pl.BlockSpec((tk, tn), lambda i, j, k: (k, j)),
        pl.BlockSpec((1, tn), lambda i, j, k: (0, j)),
        pl.BlockSpec((1, tn), lambda i, j, k: (0, j)),
    ]
    args = [a, b, s, t]
    if residual is None:
        kernel = functools.partial(_mm_bn_kernel, relu=relu, nk=nk)
    else:  # residual path always ends with ReLU (bottleneck tail)
        r = residual.astype(jnp.bfloat16)
        if (M, N) != (Mp, Np):
            r = jnp.pad(r, ((0, Mp - M), (0, Np - N)))
        in_specs.append(pl.BlockSpec((tm, tn), lambda i, j, k: (i, j)))
        args.append(r)
        kernel = functools.partial(_mm_bn_res_kernel, nk=nk)

    out = pl.pallas_call(
        kernel,
        out_shape=jax.ShapeDtypeStruct((Mp, Np), jnp.bfloat16),
        grid_spec=pltpu.PrefetchScalarGridSpec(
            num_scalar_prefetch=0,
            grid=(Mp // tm, Np // tn, nk),
            in_specs=in_specs,
            out_specs=pl.BlockSpec((tm, tn), lambda i, j, k: (i, j)),
            scratch_shapes=([pltpu.VMEM((tm, tn), jnp.float32)] if nk > 1 else []),
        ),
        compiler_params=pltpu.CompilerParams(
            dimension_semantics=("parallel", "parallel", "arbitrary")),
    )(*args)
    if (M, N) != (Mp, Np):
        out = out[:M, :N]
    return out


@functools.partial(jax.jit, static_argnames=("stride", "relu"))
def conv1x1_bn(x, w, scale, bias, residual=None, *, stride=1, relu=True):
    """1x1 conv (optional spatial stride) + fused BN (+residual) (+ReLU)."""
    if stride > 1:
        x = x[:, ::stride, ::stride, :]           # bf16 strided gather (half f32 cost)
    N, H, W, C = x.shape
    Co = w.shape[-1]
    res2d = None if residual is None else residual.reshape(N * H * W, Co)
    out = matmul_bn(x.reshape(N * H * W, C), w.reshape(C, Co), scale, bias,
                    res2d, relu=relu)
    return out.reshape(N, H, W, Co)


@functools.partial(jax.jit, static_argnames=("stride", "padding", "relu"))
def conv_im2col_bn(x, w, scale, bias, *, stride, padding, relu=True):
    """General conv via bf16 im2col feeding the fused matmul (conv1, stride-2 3x3)."""
    N, H, W, C = x.shape
    kh, kw, _, Co = w.shape
    OH = (H + 2 * padding - kh) // stride + 1
    OW = (W + 2 * padding - kw) // stride + 1
    xp = jnp.pad(x.astype(jnp.bfloat16),
                 ((0, 0), (padding, padding), (padding, padding), (0, 0)))
    parts = [xp[:, ih: ih + stride * (OH - 1) + 1: stride,
                   iw: iw + stride * (OW - 1) + 1: stride, :]
             for ih in range(kh) for iw in range(kw)]
    cols = jnp.concatenate(parts, axis=-1).reshape(N * OH * OW, kh * kw * C)
    out = matmul_bn(cols, w.reshape(kh * kw * C, Co), scale, bias, relu=relu)
    return out.reshape(N, OH, OW, Co)


@jax.jit
def conv3x3_s1_bn_relu(x, w, scale, bias):
    """Direct 3x3 / stride-1 / pad-1 conv + fused BN + ReLU (no im2col in HBM)."""
    N, H, W, C = x.shape
    Co = w.shape[-1]
    Hp, Wp = H + 2, W + 2
    Mf = N * Hp * Wp                      # output computed at padded resolution

    tk = min(_TK, _round_up(C, 128))
    Cp = _round_up(C, tk)
    tn = min(_TN, _round_up(Co, 128))
    Cop = _round_up(Co, tn)
    if Cop // tn == 1 and Cop >= 256:     # prefer a channel split for the parallel grid
        tn = 128

    # Halo: taps only need rows up to 2*Wp+2 past the lo block (multiple of 16 so the
    # bf16 halo block stays sublane-tile aligned).
    h = _round_up(2 * Wp + 2, 16)
    cap = max(h, (_TM // h) * h)          # largest multiple of h <= _TM
    nb = -(-Mf // cap)
    if nb == 1 and Cop // tn == 1 and Mf >= 2 * h:
        nb = 2                            # give v7x's two TCs an M split when no N split
    tm = _round_up(-(-Mf // nb), h)       # tm must stay a multiple of h (hi index map)
    Mfp = _round_up(Mf, tm)
    assert tm % h == 0 and h >= 2 * Wp + 2

    # Flattened, spatially padded bf16 activation + a tm-row tail so every shifted tap
    # read and the halo block of the last tile stay in bounds (rows = Mfp + tm is a
    # multiple of both tm and h).
    xq = x.astype(jnp.bfloat16)
    if C != Cp:
        xq = jnp.pad(xq, ((0, 0), (0, 0), (0, 0), (0, Cp - C)))
    xp = jnp.pad(xq, ((0, 0), (1, 1), (1, 1), (0, 0))).reshape(Mf, Cp)
    xp = jnp.pad(xp, ((0, Mfp + tm - Mf), (0, 0)))

    wq = w.astype(jnp.bfloat16)
    if (C, Co) != (Cp, Cop):
        wq = jnp.pad(wq, ((0, 0), (0, 0), (0, Cp - C), (0, Cop - Co)))
    wp = wq.reshape(9, Cp, Cop)
    s = scale.astype(jnp.float32)
    t = bias.astype(jnp.float32)
    if Co != Cop:
        s = jnp.pad(s, (0, Cop - Co))
        t = jnp.pad(t, (0, Cop - Co))
    s = s.reshape(1, Cop)
    t = t.reshape(1, Cop)

    tap_offs = tuple(ih * Wp + iw for ih in range(3) for iw in range(3))
    assert max(tap_offs) <= h
    nk = Cp // tk
    hi_step = tm // h                     # hi block index stride per M tile

    out = pl.pallas_call(
        functools.partial(_conv3x3_kernel, tap_offs=tap_offs, nk=nk),
        out_shape=jax.ShapeDtypeStruct((Mfp, Cop), jnp.bfloat16),
        grid_spec=pltpu.PrefetchScalarGridSpec(
            num_scalar_prefetch=0,
            grid=(Mfp // tm, Cop // tn, nk),
            in_specs=[
                pl.BlockSpec((tm, tk), lambda i, j, k: (i, k)),                 # lo rows
                pl.BlockSpec((h, tk), lambda i, j, k: ((i + 1) * hi_step, k)),  # halo
                pl.BlockSpec((9, tk, tn), lambda i, j, k: (0, k, j)),           # 9 taps
                pl.BlockSpec((1, tn), lambda i, j, k: (0, j)),
                pl.BlockSpec((1, tn), lambda i, j, k: (0, j)),
            ],
            out_specs=pl.BlockSpec((tm, tn), lambda i, j, k: (i, j)),
            scratch_shapes=[
                pltpu.VMEM((tm + h, tk), jnp.bfloat16),   # staged lo + halo
                pltpu.VMEM((tm, tn), jnp.float32),        # f32 accumulator
            ],
        ),
        compiler_params=pltpu.CompilerParams(
            dimension_semantics=("parallel", "parallel", "arbitrary")),
    )(xp, xp, wp, s, t)
    # Keep only rows belonging to valid output positions (oh < H, ow < W).
    out = out[:Mf, :Co]
    return out.reshape(N, Hp, Wp, Co)[:, :H, :W, :]


@jax.jit
def maxpool3x3_s2_p1(x):
    """PyTorch MaxPool2d(kernel_size=3, stride=2, padding=1) on NHWC bf16 input."""
    N, H, W, C = x.shape
    OH = (H + 2 - 3) // 2 + 1
    OW = (W + 2 - 3) // 2 + 1
    xp = jnp.pad(x, ((0, 0), (1, 1), (1, 1), (0, 0)), constant_values=-jnp.inf)
    views = [xp[:, ih: ih + 2 * (OH - 1) + 1: 2,
                   iw: iw + 2 * (OW - 1) + 1: 2, :].reshape(-1)
             for ih in range(3) for iw in range(3)]
    E = N * OH * OW * C
    rows = _round_up(E, 128) // 128
    tr = min(512, _round_up(rows, 16))
    rows_p = _round_up(rows, tr)
    Ep = rows_p * 128
    views = [jnp.pad(v, (0, Ep - E)).reshape(rows_p, 128) for v in views]
    out = pl.pallas_call(
        _max9_kernel,
        out_shape=jax.ShapeDtypeStruct((rows_p, 128), x.dtype),
        grid_spec=pltpu.PrefetchScalarGridSpec(
            num_scalar_prefetch=0,
            grid=(rows_p // tr,),
            in_specs=[pl.BlockSpec((tr, 128), lambda i: (i, 0))] * 9,
            out_specs=pl.BlockSpec((tr, 128), lambda i: (i, 0)),
        ),
        compiler_params=pltpu.CompilerParams(dimension_semantics=("parallel",)),
    )(*views)
    return out.reshape(-1)[:E].reshape(N, OH, OW, C)


# -----------------------------------------------------------------------------
# Deterministic ResNet-101 backbone parameters
# -----------------------------------------------------------------------------
def _init_conv(key, kh, kw, cin, cout):
    fan_in = kh * kw * cin
    # He init scaled by 0.5 to keep 33 residual blocks numerically tame.
    w = jax.random.normal(key, (kh, kw, cin, cout), jnp.float32)
    return (w * 0.5 * (2.0 / fan_in) ** 0.5).astype(jnp.bfloat16)


def _init_bn(key, c):
    # Inference-mode BatchNorm folded to scale/bias; non-trivial (but tame) gamma /
    # beta / running stats so the fused epilogue is exercised with real values.
    k1, k2, k3, k4 = jax.random.split(key, 4)
    gamma = 1.0 + 0.1 * jax.random.normal(k1, (c,), jnp.float32)
    beta = 0.05 * jax.random.normal(k2, (c,), jnp.float32)
    var = 1.0 + 0.1 * jax.random.uniform(k3, (c,), jnp.float32)
    mean = 0.05 * jax.random.normal(k4, (c,), jnp.float32)
    scale = gamma / jnp.sqrt(var + 1e-5)
    bias = beta - mean * scale
    return scale, bias


def init_resnet101_params(seed=0):
    root = jax.random.PRNGKey(seed)
    counter = [0]

    def nk_():
        counter[0] += 1
        return jax.random.fold_in(root, counter[0])

    params = {"conv1_w": _init_conv(nk_(), 7, 7, 3, 64), "bn1": _init_bn(nk_(), 64)}

    layer_cfg = [  # (mid_c, out_c, num_blocks) -> ResNet-101
        (64, 256, 3),
        (128, 512, 4),
        (256, 1024, 23),
        (512, 2048, 3),
    ]
    in_c = 64
    layers = []
    for mid_c, out_c, n_blocks in layer_cfg:
        blocks = []
        for b in range(n_blocks):
            blk = {
                "w1": _init_conv(nk_(), 1, 1, in_c, mid_c), "bn1": _init_bn(nk_(), mid_c),
                "w2": _init_conv(nk_(), 3, 3, mid_c, mid_c), "bn2": _init_bn(nk_(), mid_c),
                "w3": _init_conv(nk_(), 1, 1, mid_c, out_c), "bn3": _init_bn(nk_(), out_c),
            }
            if b == 0:  # downsample branch: stride != 1 or in_c != out_c
                blk["wd"] = _init_conv(nk_(), 1, 1, in_c, out_c)
                blk["bnd"] = _init_bn(nk_(), out_c)
            blocks.append(blk)
            in_c = out_c
        layers.append(blocks)
    params["layers"] = layers
    return params


# -----------------------------------------------------------------------------
# Forward pass (== BaseResnet.forward)
# -----------------------------------------------------------------------------
def bottleneck(x, p, stride):
    out = conv1x1_bn(x, p["w1"], *p["bn1"], stride=1, relu=True)
    if stride == 1:
        out = conv3x3_s1_bn_relu(out, p["w2"], *p["bn2"])
    else:  # the three stride-2 3x3 convs go through bf16 im2col + the fused matmul
        out = conv_im2col_bn(out, p["w2"], *p["bn2"], stride=stride, padding=1,
                             relu=True)
    if "wd" in p:
        identity = conv1x1_bn(x, p["wd"], *p["bnd"], stride=stride, relu=False)
    else:
        identity = x
    # conv3 + bn3 + residual add + relu fused in one kernel.
    return conv1x1_bn(out, p["w3"], *p["bn3"], identity, stride=1, relu=True)


@jax.jit
def base_resnet_forward(params, x_nchw):
    # PyTorch NCHW f32 in -> NHWC bf16 for the kernels (single cast at the boundary).
    x = jnp.transpose(x_nchw, (0, 2, 3, 1)).astype(jnp.bfloat16)
    x = conv_im2col_bn(x, params["conv1_w"], *params["bn1"],
                       stride=2, padding=3, relu=True)   # conv1 + bn1 + relu fused
    x = maxpool3x3_s2_p1(x)                              # maxpool 3x3/s2/p1
    for li, blocks in enumerate(params["layers"]):       # layer1..layer4
        for bi, blk in enumerate(blocks):
            stride = 2 if (bi == 0 and li > 0) else 1
            x = bottleneck(x, blk, stride)
    # Back to NCHW f32 to match the PyTorch module's output convention.
    return jnp.transpose(x, (0, 3, 1, 2)).astype(jnp.float32)


if __name__ == "__main__":
    key = jax.random.PRNGKey(0)
    # Small input consistent with the module: NCHW, 3 channels (ImageNet-style).
    x = jax.random.normal(key, (2, 3, 64, 64), jnp.float32)

    params = init_resnet101_params(seed=0)
    out = base_resnet_forward(params, x)
    out = jax.block_until_ready(out)

    assert out.shape == (2, 2048, 2, 2), out.shape
    assert bool(jnp.all(jnp.isfinite(out)))
    print("KERNEL_OK")
</pallas_src>

<mosaic_0001>
module attributes {stable_mosaic.version = 11 : i64} {
  func.func @_mm_bn_kernel(%arg0: i32, %arg1: i32, %arg2: i32, %arg3: memref<512x256xbf16, #tpu.memory_space<vmem>>, %arg4: memref<256x128xbf16, #tpu.memory_space<vmem>>, %arg5: memref<1x128xf32, #tpu.memory_space<vmem>>, %arg6: memref<1x128xf32, #tpu.memory_space<vmem>>, %arg7: memref<512x128xbf16, #tpu.memory_space<vmem>>) attributes {dimension_semantics = [#tpu.dimension_semantics<parallel>, #tpu.dimension_semantics<parallel>, #tpu.dimension_semantics<arbitrary>], iteration_bounds = array<i64: 4, 1, 1>, scalar_prefetch = 0 : i64, scratch_operands = 0 : i64, tpu.core_type = #tpu.core_type<tc>, window_params = [{transform_indices = @transform_0, window_bounds = array<i64: 512, 256>}, {transform_indices = @transform_1, window_bounds = array<i64: 256, 128>}, {transform_indices = @transform_2, window_bounds = array<i64: 1, 128>}, {transform_indices = @transform_3, window_bounds = array<i64: 1, 128>}, {transform_indices = @transform_4, window_bounds = array<i64: 512, 128>}]} {
    %c0 = arith.constant 0 : index
    %c0_0 = arith.constant 0 : index
    %0 = vector.load %arg3[%c0, %c0_0] : memref<512x256xbf16, #tpu.memory_space<vmem>>, vector<512x256xbf16>
    %c0_1 = arith.constant 0 : index
    %c0_2 = arith.constant 0 : index
    %1 = vector.load %arg4[%c0_1, %c0_2] : memref<256x128xbf16, #tpu.memory_space<vmem>>, vector<256x128xbf16>
    %cst = arith.constant dense<0.000000e+00> : vector<512x128xf32>
    %2 = tpu.matmul %0, %1, %cst {dimension_numbers = #tpu.dot_dimension_numbers<[1], [0], [0], [1], [0, 0, 1, 1], [], []>} : vector<512x256xbf16>, vector<256x128xbf16>, vector<512x128xf32> -> vector<512x128xf32>
    %c0_3 = arith.constant 0 : index
    %c0_4 = arith.constant 0 : index
    %3 = vector.load %arg5[%c0_3, %c0_4] : memref<1x128xf32, #tpu.memory_space<vmem>>, vector<1x128xf32>
    %4 = vector.broadcast %3 : vector<1x128xf32> to vector<512x128xf32>
    %5 = arith.mulf %2, %4 : vector<512x128xf32>
    %c0_5 = arith.constant 0 : index
    %c0_6 = arith.constant 0 : index
    %6 = vector.load %arg6[%c0_5, %c0_6] : memref<1x128xf32, #tpu.memory_space<vmem>>, vector<1x128xf32>
    %7 = vector.broadcast %6 : vector<1x128xf32> to vector<512x128xf32>
    %8 = arith.addf %5, %7 : vector<512x128xf32>
    %cst_7 = arith.constant 0.000000e+00 : f32
    %9 = vector.broadcast %cst_7 : f32 to vector<512x128xf32>
    %10 = arith.maximumf %8, %9 : vector<512x128xf32>
    %11 = arith.truncf %10 : vector<512x128xf32> to vector<512x128xbf16>
    %c0_8 = arith.constant 0 : index
    %c0_9 = arith.constant 0 : index
    %12 = vector.load %arg7[%c0_8, %c0_9] : memref<512x128xbf16, #tpu.memory_space<vmem>>, vector<512x128xbf16>
    tpu.vector_store %arg7[%c0_8, %c0_9], %11 {strides = array<i32>} : memref<512x128xbf16, #tpu.memory_space<vmem>>, vector<512x128xbf16>,
    return
  }
  func.func @transform_0(%arg0: i32, %arg1: i32, %arg2: i32) -> (i32, i32) {
    %c0_i32 = arith.constant 0 : i32
    return %arg0, %arg2 : i32, i32
  }
  func.func @transform_1(%arg0: i32, %arg1: i32, %arg2: i32) -> (i32, i32) {
    %c0_i32 = arith.constant 0 : i32
    return %arg2, %arg1 : i32, i32
  }
  func.func @transform_2(%arg0: i32, %arg1: i32, %arg2: i32) -> (i32, i32) {
    %c0_i32 = arith.constant 0 : i32
    %c0_i32_0 = arith.constant 0 : i32
    return %c0_i32, %arg1 : i32, i32
  }
  func.func @transform_3(%arg0: i32, %arg1: i32, %arg2: i32) -> (i32, i32) {
    %c0_i32 = arith.constant 0 : i32
    %c0_i32_0 = arith.constant 0 : i32
    return %c0_i32, %arg1 : i32, i32
  }
  func.func @transform_4(%arg0: i32, %arg1: i32, %arg2: i32) -> (i32, i32) {
    %c0_i32 = arith.constant 0 : i32
    return %arg0, %arg1 : i32, i32
  }
}

</mosaic_0001>

<llo_original>
// kernel: matmul_bn.1
$region0: #{matmul_bn.1}
  #allocation0 [shape = 'u32[]', space=smem, size = 0x4, offset = 0x4, fixed_abs, tag = 'smem constant byte address 0x4 - core index']
  #allocation1 [shape = 'u32[144,128]{1,0:T(1,128)}', space=vmem, size = 0x12000, scoped, tag = 'internal scratch']
  %s0 = inlined_call_operand.vmem [shape: bf16[2048,256], index: 0, kind: input, shape index: {}]
  %s1 = inlined_call_operand.vmem [shape: bf16[256,128], index: 1, kind: input, shape index: {}]
  %s2 = inlined_call_operand.vmem [shape: f32[1,128], index: 2, kind: input, shape index: {}]
  %s3 = inlined_call_operand.vmem [shape: f32[1,128], index: 3, kind: input, shape index: {}]
  %s4 = inlined_call_operand.vmem [shape: bf16[2048,128], index: 4, kind: output, shape index: {}]
  %s5 = sld [smem:[#allocation0]]
  $region49: #{matmul_bn.1} parent=0
    _
  %s7 = ssub.s32 1, %s5
  %s8 = scalar_select 0, %s7, %s5
  loop: start=0, step=1, limit=6
  $region2: #{matmul_bn.1} parent=0 // loop_pre_header
    _
  $region3: #{matmul_bn.1} parent=0 // loop_header
    %s10 = sphi 0, %s14
    %p11 = scmp.ge.s32.totalorder %s10, 6
    %s17 = sphi 0, %s36
    %s18 = sphi 0, %s32
    %s19 = sphi 0, %s28
    %s20 = sphi 0, %s17
    %s21 = sphi 0, %s18
    %s22 = sphi 0, %s19
    %s23 = sphi 0, %s20
    %s24 = sphi 0, %s21
    %s25 = sphi 0, %s22
    %s41 = sphi 0, %s43
    %s44 = sphi 0, %s41
    %s45 = sphi 0, %s44
    %s61 = sphi 0, %s45
    %s69 = sphi 0, %s71
    %s72 = sphi 0, %s69
    %s73 = sphi 0, %s72
    %s89 = sphi 0, %s73
    %s95 = sphi 0, %s97
    %s98 = sphi 0, %s95
    %s99 = sphi 0, %s98
    %s115 = sphi 0, %s99
    %s121 = sphi 0, %s123
    %s124 = sphi 0, %s121
    %s125 = sphi 0, %s124
    %s141 = sphi 0, %s125
    %s149 = sphi 0, %s151
    %s152 = sphi 0, %s149
    %s153 = sphi 0, %s152
    %s169 = sphi 0, %s153
  $region4: #{matmul_bn.1} parent=0 // loop_header_branch
    %13 = sbr.rel (%p11) target = $region8
  $region5: #{matmul_bn.1} parent=0 // loop_body
    %s15 = ssub.s32 %s10, 1
    %s16 = ssub.s32 %s10, 2
    %s26 = sadd.s32 1, %s19
    %p27 = scmp.ge.s32.totalorder %s26, 1
    %s28 = scalar_select %p27, 0, %s26
    %s29 = sadd.s32 1, %s18
    %s30 = scalar_select %p27, %s29, %s18
    %p31 = scmp.ge.s32.totalorder %s30, 1
    %s32 = scalar_select %p31, 0, %s30
    %s33 = sadd.s32 1, %s17
    %s34 = scalar_select %p31, %s33, %s17
    %p35 = scmp.ge.s32.totalorder %s34, 4
    %s36 = scalar_select %p35, 0, %s34
    %s37 = ssub.s32 %s17, %s36
    %s38 = ssub.s32 %s19, %s28
    %s39 = sor.u32 %s37, %s38
    %p40 = scmp.eq.s32.totalorder %s39, 0
    %s42 = sadd.s32 %s41, 1
    %s43 = scalar_select %p40, %s41, %s42
    %p46 = pneg %p40
    %p47 = scmp.eq.s32.totalorder %s10, 3
    %p48 = por %p46, %p47
    %p49 = scmp.ne.s32.totalorder %s41, %s44
    %p50 = scmp.eq.s32.totalorder %s10, 0
    %p51 = por %p49, %p50
    %p52 = scmp.ne.s32.totalorder %s41, %s44
    %p53 = scmp.eq.s32.totalorder %s15, 3
    %p54 = por %p52, %p53
    %p55 = scmp.ne.s32.totalorder %s44, %s45
    %p56 = scmp.eq.s32.totalorder %s15, 0
    %p57 = por %p55, %p56
    %p58 = scmp.ne.s32.totalorder %s44, %s45
    %p59 = scmp.eq.s32.totalorder %s16, 3
    %p60 = por %p58, %p59
    %p62 = scmp.ne.s32.totalorder %s45, %s61
    %p63 = scmp.eq.s32.totalorder %s16, 0
    %p64 = por %p62, %p63
    %s65 = ssub.s32 %s19, %s28
    %s66 = ssub.s32 %s18, %s32
    %s67 = sor.u32 %s65, %s66
    %p68 = scmp.eq.s32.totalorder %s67, 0
    %s70 = sadd.s32 %s69, 1
    %s71 = scalar_select %p68, %s69, %s70
    %p74 = pneg %p68
    %p75 = scmp.eq.s32.totalorder %s10, 3
    %p76 = por %p74, %p75
    %p77 = scmp.ne.s32.totalorder %s69, %s72
    %p78 = scmp.eq.s32.totalorder %s10, 0
    %p79 = por %p77, %p78
    %p80 = scmp.ne.s32.totalorder %s69, %s72
    %p81 = scmp.eq.s32.totalorder %s15, 3
    %p82 = por %p80, %p81
    %p83 = scmp.ne.s32.totalorder %s72, %s73
    %p84 = scmp.eq.s32.totalorder %s15, 0
    %p85 = por %p83, %p84
    %p86 = scmp.ne.s32.totalorder %s72, %s73
    %p87 = scmp.eq.s32.totalorder %s16, 3
    %p88 = por %p86, %p87
    %p90 = scmp.ne.s32.totalorder %s73, %s89
    %p91 = scmp.eq.s32.totalorder %s16, 0
    %p92 = por %p90, %p91
    %s93 = ssub.s32 %s18, %s32
    %p94 = scmp.eq.s32.totalorder %s93, 0
    %s96 = sadd.s32 %s95, 1
    %s97 = scalar_select %p94, %s95, %s96
    %p100 = pneg %p94
    %p101 = scmp.eq.s32.totalorder %s10, 3
    %p102 = por %p100, %p101
    %p103 = scmp.ne.s32.totalorder %s95, %s98
    %p104 = scmp.eq.s32.totalorder %s10, 0
    %p105 = por %p103, %p104
    %p106 = scmp.ne.s32.totalorder %s95, %s98
    %p107 = scmp.eq.s32.totalorder %s15, 3
    %p108 = por %p106, %p107
    %p109 = scmp.ne.s32.totalorder %s98, %s99
    %p110 = scmp.eq.s32.totalorder %s15, 0
    %p111 = por %p109, %p110
    %p112 = scmp.ne.s32.totalorder %s98, %s99
    %p113 = scmp.eq.s32.totalorder %s16, 3
    %p114 = por %p112, %p113
    %p116 = scmp.ne.s32.totalorder %s99, %s115
    %p117 = scmp.eq.s32.totalorder %s16, 0
    %p118 = por %p116, %p117
    %s119 = ssub.s32 %s18, %s32
    %p120 = scmp.eq.s32.totalorder %s119, 0
    %s122 = sadd.s32 %s121, 1
    %s123 = scalar_select %p120, %s121, %s122
    %p126 = pneg %p120
    %p127 = scmp.eq.s32.totalorder %s10, 3
    %p128 = por %p126, %p127
    %p129 = scmp.ne.s32.totalorder %s121, %s124
    %p130 = scmp.eq.s32.totalorder %s10, 0
    %p131 = por %p129, %p130
    %p132 = scmp.ne.s32.totalorder %s121, %s124
    %p133 = scmp.eq.s32.totalorder %s15, 3
    %p134 = por %p132, %p133
    %p135 = scmp.ne.s32.totalorder %s124, %s125
    %p136 = scmp.eq.s32.totalorder %s15, 0
    %p137 = por %p135, %p136
    %p138 = scmp.ne.s32.totalorder %s124, %s125
    %p139 = scmp.eq.s32.totalorder %s16, 3
    %p140 = por %p138, %p139
    %p142 = scmp.ne.s32.totalorder %s125, %s141
    %p143 = scmp.eq.s32.totalorder %s16, 0
    %p144 = por %p142, %p143
    %s145 = ssub.s32 %s17, %s36
    %s146 = ssub.s32 %s18, %s32
    %s147 = sor.u32 %s145, %s146
    %p148 = scmp.eq.s32.totalorder %s147, 0
    %s150 = sadd.s32 %s149, 1
    %s151 = scalar_select %p148, %s149, %s150
    %p154 = pneg %p148
    %p155 = scmp.eq.s32.totalorder %s10, 3
    %p156 = por %p154, %p155
    %p157 = scmp.ne.s32.totalorder %s149, %s152
    %p158 = scmp.eq.s32.totalorder %s10, 0
    %p159 = por %p157, %p158
    %p160 = scmp.ne.s32.totalorder %s149, %s152
    %p161 = scmp.eq.s32.totalorder %s15, 3
    %p162 = por %p160, %p161
    %p163 = scmp.ne.s32.totalorder %s152, %s153
    %p164 = scmp.eq.s32.totalorder %s15, 0
    %p165 = por %p163, %p164
    %p166 = scmp.ne.s32.totalorder %s152, %s153
    %p167 = scmp.eq.s32.totalorder %s16, 3
    %p168 = por %p166, %p167
    %p170 = scmp.ne.s32.totalorder %s153, %s169
    %p171 = scmp.eq.s32.totalorder %s16, 0
    %p172 = por %p170, %p171
    %p173 = scmp.le.s32.totalorder 1, %s10
    %p174 = scmp.lt.s32.totalorder %s10, 5
    %p175 = pnand %p173, %p174
    %p176 = pneg %p175
    // Predicated region
    $region9: #{matmul_bn.1} parent=5 // pred_check
      _
    $region10: #{matmul_bn.1} parent=5 // pred_check_branch
      %178 = sbr.rel (%p175) target = $region12
    $region11: #{matmul_bn.1} parent=5 // pred_region
      %s179 = ssub.s32 %s10, 1
      // Predicated region
      $region13: #{matmul_bn.1} parent=11 // pred_check
        %p180 = pneg %p85
      $region14: #{matmul_bn.1} parent=11 // pred_check_branch
        %182 = sbr.rel (%p180) target = $region16
      $region15: #{matmul_bn.1} parent=11 // pred_region
        %s183 = smul.u32 32, %s22
        %p184 = scmp.lt.s32.totalorder %s183, 31
        %s185 = scalar_select %p184, %s183, 31
        %p186 = scmp.lt.s32.totalorder %s21, 0
        %s187 = scalar_select %p186, %s21, 0
        %s188 = sadd.s32 %s187, %s185
        %s189 = smul.addr %s188, 4
        %s190 = scalar_lea.vmem %s1, %s189
        %s191 = smul.u32 32, %s22
      $region16: #{matmul_bn.1} parent=11 // pred_fallthru
        _
      // Predicated region
      $region17: #{matmul_bn.1} parent=11 // pred_check
        %p192 = pneg %p111
      $region18: #{matmul_bn.1} parent=11 // pred_check_branch
        %194 = sbr.rel (%p192) target = $region20
      $region19: #{matmul_bn.1} parent=11 // pred_region
        %p195 = scmp.lt.s32.totalorder %s21, 0
        %s196 = scalar_select %p195, %s21, 0
        %s197 = scalar_lea.vmem %s2, %s196
      $region20: #{matmul_bn.1} parent=11 // pred_fallthru
        _
      // Predicated region
      $region21: #{matmul_bn.1} parent=11 // pred_check
        %p198 = pneg %p137
      $region22: #{matmul_bn.1} parent=11 // pred_check_branch
        %200 = sbr.rel (%p198) target = $region24
      $region23: #{matmul_bn.1} parent=11 // pred_region
        %p201 = scmp.lt.s32.totalorder %s21, 0
        %s202 = scalar_select %p201, %s21, 0
        %s203 = scalar_lea.vmem %s3, %s202
      $region24: #{matmul_bn.1} parent=11 // pred_fallthru
        _
    $region12: #{matmul_bn.1} parent=5 // pred_fallthru
      _
    %p204 = scmp.lt.s32.totalorder %s10, 4
    // Predicated region
    $region25: #{matmul_bn.1} parent=5 // pred_check
      %p205 = pneg %p204
    $region26: #{matmul_bn.1} parent=5 // pred_check_branch
      %207 = sbr.rel (%p205) target = $region28
    $region27: #{matmul_bn.1} parent=5 // pred_region
      // Predicated region
      $region29: #{matmul_bn.1} parent=27 // pred_check
        %p208 = pneg %p51
      $region30: #{matmul_bn.1} parent=27 // pred_check_branch
        %210 = sbr.rel (%p208) target = $region32
      $region31: #{matmul_bn.1} parent=27 // pred_region
        %s211 = smul.u32 64, %s17
        %s212 = smul.u32 2, %s19
        %p213 = scmp.lt.s32.totalorder %s211, 255
        %s214 = scalar_select %p213, %s211, 255
        %p215 = scmp.lt.s32.totalorder %s212, 1
        %s216 = scalar_select %p215, %s212, 1
        %s217 = smul.addr %s214, 2
        %s218 = sadd.s32 %s216, %s217
        %s219 = smul.addr %s218, 4
        %s220 = scalar_lea.vmem %s0, %s219
        %s221 = smul.u32 64, %s17
        %s222 = smul.u32 2, %s19
      $region32: #{matmul_bn.1} parent=27 // pred_fallthru
        _
    $region28: #{matmul_bn.1} parent=5 // pred_fallthru
      _
    %p223 = scmp.le.s32.totalorder 1, %s10
    %p224 = scmp.lt.s32.totalorder %s10, 5
    %p225 = pnand %p223, %p224
    %p226 = pneg %p225
    // Predicated region
    $region33: #{matmul_bn.1} parent=5 // pred_check
      _
    $region34: #{matmul_bn.1} parent=5 // pred_check_branch
      %228 = sbr.rel (%p225) target = $region36
    $region35: #{matmul_bn.1} parent=5 // pred_region
      %s229 = ssub.s32 %s10, 1
      %s230 = smul.u32 64, %s20
      %s231 = smul.u32 2, %s22
      %p232 = scmp.lt.s32.totalorder %s230, 255
      %s233 = scalar_select %p232, %s230, 255
      %p234 = scmp.lt.s32.totalorder %s231, 1
      %s235 = scalar_select %p234, %s231, 1
      %s236 = smul.addr %s233, 2
      %s237 = sadd.s32 %s235, %s236
      %s238 = smul.addr %s237, 4
      %s239 = scalar_lea.vmem %s0, %s238
      %p240 = pneg %p57
      %p241 = pneg %p54
      %s242 = smul.u32 32, %s22
      %p243 = scmp.lt.s32.totalorder %s242, 31
      %s244 = scalar_select %p243, %s242, 31
      %p245 = scmp.lt.s32.totalorder %s21, 0
      %s246 = scalar_select %p245, %s21, 0
      %s247 = sadd.s32 %s246, %s244
      %s248 = smul.addr %s247, 4
      %s249 = scalar_lea.vmem %s1, %s248
      %p250 = pneg %p85
      %p251 = pneg %p82
      %p252 = scmp.lt.s32.totalorder %s21, 0
      %s253 = scalar_select %p252, %s21, 0
      %s254 = scalar_lea.vmem %s2, %s253
      %p255 = pneg %p111
      %p256 = pneg %p108
      %p257 = scmp.lt.s32.totalorder %s21, 0
      %s258 = scalar_select %p257, %s21, 0
      %s259 = scalar_lea.vmem %s3, %s258
      %p260 = pneg %p137
      %p261 = pneg %p134
      %p262 = pneg %p165
      %p263 = pneg %p162
      %s264 = smul.u32 64, %s20
      %p265 = scmp.lt.s32.totalorder %s264, 255
      %s266 = scalar_select %p265, %s264, 255
      %p267 = scmp.lt.s32.totalorder %s21, 0
      %s268 = scalar_select %p267, %s21, 0
      %s269 = sadd.s32 %s268, %s266
      %s270 = smul.addr %s269, 4
      %s271 = scalar_lea.vmem %s4, %s270
      %s272 = smul.u32 64, %s20
      %s273 = smul.u32 2, %s22
      %p274 = scmp.lt.s32.totalorder %s272, 255
      %s275 = scalar_select %p274, %s272, 255
      %p276 = scmp.lt.s32.totalorder %s273, 1
      %s277 = scalar_select %p276, %s273, 1
      %s278 = smul.addr %s275, 2
      %s279 = sadd.s32 %s277, %s278
      %s280 = smul.addr %s279, 4
      %s281 = scalar_lea.vmem %s0, %s280
      %s282 = smul.u32 64, %s20
      %s283 = smul.u32 2, %s22
      %s284 = smul.u32 32, %s22
      %p285 = scmp.lt.s32.totalorder %s284, 31
      %s286 = scalar_select %p285, %s284, 31
      %p287 = scmp.lt.s32.totalorder %s21, 0
      %s288 = scalar_select %p287, %s21, 0
      %s289 = sadd.s32 %s288, %s286
      %s290 = smul.addr %s289, 4
      %s291 = scalar_lea.vmem %s1, %s290
      %s292 = smul.u32 32, %s22
      %p293 = scmp.lt.s32.totalorder %s21, 0
      %s294 = scalar_select %p293, %s21, 0
      %s295 = scalar_lea.vmem %s2, %s294
      %p296 = scmp.lt.s32.totalorder %s21, 0
      %s297 = scalar_select %p296, %s21, 0
      %s298 = scalar_lea.vmem %s3, %s297
      %s299 = smul.u32 64, %s20
      %p300 = scmp.lt.s32.totalorder %s299, 255
      %s301 = scalar_select %p300, %s299, 255
      %p302 = scmp.lt.s32.totalorder %s21, 0
      %s303 = scalar_select %p302, %s21, 0
      %s304 = sadd.s32 %s303, %s301
      %s305 = smul.addr %s304, 4
      %s306 = scalar_lea.vmem %s4, %s305
      %s307 = smul.u32 64, %s20
      %v309 = vld [vmem:[%s281] sm:$0xff]
      %v310 = vld [vmem:[%s281 + $0x8] sm:$0xff]
      %v311 = vld [vmem:[%s281 + $0x10] sm:$0xff]
      %v312 = vld [vmem:[%s281 + $0x18] sm:$0xff]
      %v313 = vld [vmem:[%s281 + $0x20] sm:$0xff]
      %v314 = vld [vmem:[%s281 + $0x28] sm:$0xff]
      %v315 = vld [vmem:[%s281 + $0x30] sm:$0xff]
      %v316 = vld [vmem:[%s281 + $0x38] sm:$0xff]
      %v317 = vld [vmem:[%s281 + $0x40] sm:$0xff]
      %v318 = vld [vmem:[%s281 + $0x48] sm:$0xff]
      %v319 = vld [vmem:[%s281 + $0x50] sm:$0xff]
      %v320 = vld [vmem:[%s281 + $0x58] sm:$0xff]
      %v321 = vld [vmem:[%s281 + $0x60] sm:$0xff]
      %v322 = vld [vmem:[%s281 + $0x68] sm:$0xff]
      %v323 = vld [vmem:[%s281 + $0x70] sm:$0xff]
      %v324 = vld [vmem:[%s281 + $0x78] sm:$0xff]
      %v325 = vld [vmem:[%s281 + $0x80] sm:$0xff]
      %v326 = vld [vmem:[%s281 + $0x88] sm:$0xff]
      %v327 = vld [vmem:[%s281 + $0x90] sm:$0xff]
      %v328 = vld [vmem:[%s281 + $0x98] sm:$0xff]
      %v329 = vld [vmem:[%s281 + $0xa0] sm:$0xff]
      %v330 = vld [vmem:[%s281 + $0xa8] sm:$0xff]
      %v331 = vld [vmem:[%s281 + $0xb0] sm:$0xff]
      %v332 = vld [vmem:[%s281 + $0xb8] sm:$0xff]
      %v333 = vld [vmem:[%s281 + $0xc0] sm:$0xff]
      %v334 = vld [vmem:[%s281 + $0xc8] sm:$0xff]
      %v335 = vld [vmem:[%s281 + $0xd0] sm:$0xff]
      %v336 = vld [vmem:[%s281 + $0xd8] sm:$0xff]
      %v337 = vld [vmem:[%s281 + $0xe0] sm:$0xff]
      %v338 = vld [vmem:[%s281 + $0xe8] sm:$0xff]
      %v339 = vld [vmem:[%s281 + $0xf0] sm:$0xff]
      %v340 = vld [vmem:[%s281 + $0xf8] sm:$0xff]
      %v341 = vld [vmem:[%s281 + $0x100] sm:$0xff]
      %v342 = vld [vmem:[%s281 + $0x108] sm:$0xff]
      %v343 = vld [vmem:[%s281 + $0x110] sm:$0xff]
      %v344 = vld [vmem:[%s281 + $0x118] sm:$0xff]
      %v345 = vld [vmem:[%s281 + $0x120] sm:$0xff]
      %v346 = vld [vmem:[%s281 + $0x128] sm:$0xff]
      %v347 = vld [vmem:[%s281 + $0x130] sm:$0xff]
      %v348 = vld [vmem:[%s281 + $0x138] sm:$0xff]
      %v349 = vld [vmem:[%s281 + $0x140] sm:$0xff]
      %v350 = vld [vmem:[%s281 + $0x148] sm:$0xff]
      %v351 = vld [vmem:[%s281 + $0x150] sm:$0xff]
      %v352 = vld [vmem:[%s281 + $0x158] sm:$0xff]
      %v353 = vld [vmem:[%s281 + $0x160] sm:$0xff]
      %v354 = vld [vmem:[%s281 + $0x168] sm:$0xff]
      %v355 = vld [vmem:[%s281 + $0x170] sm:$0xff]
      %v356 = vld [vmem:[%s281 + $0x178] sm:$0xff]
      %v357 = vld [vmem:[%s281 + $0x180] sm:$0xff]
      %v358 = vld [vmem:[%s281 + $0x188] sm:$0xff]
      %v359 = vld [vmem:[%s281 + $0x190] sm:$0xff]
      %v360 = vld [vmem:[%s281 + $0x198] sm:$0xff]
      %v361 = vld [vmem:[%s281 + $0x1a0] sm:$0xff]
      %v362 = vld [vmem:[%s281 + $0x1a8] sm:$0xff]
      %v363 = vld [vmem:[%s281 + $0x1b0] sm:$0xff]
      %v364 = vld [vmem:[%s281 + $0x1b8] sm:$0xff]
      %v365 = vld [vmem:[%s281 + $0x1c0] sm:$0xff]
      %v366 = vld [vmem:[%s281 + $0x1c8] sm:$0xff]
      %v367 = vld [vmem:[%s281 + $0x1d0] sm:$0xff]
      %v368 = vld [vmem:[%s281 + $0x1d8] sm:$0xff]
      %v369 = vld [vmem:[%s281 + $0x1e0] sm:$0xff]
      %v370 = vld [vmem:[%s281 + $0x1e8] sm:$0xff]
      %v371 = vld [vmem:[%s281 + $0x1f0] sm:$0xff]
      %v372 = vld [vmem:[%s281 + $0x1f8] sm:$0xff]
      %v373 = vld [vmem:[%s291] sm:$0xf]
      %v374 = vld [vmem:[%s291 + $0x4] sm:$0xf]
      %v375 = vld [vmem:[%s291 + $0x8] sm:$0xf]
      %v376 = vld [vmem:[%s291 + $0xc] sm:$0xf]
      %v377 = vld [vmem:[%s291 + $0x10] sm:$0xf]
      %v378 = vld [vmem:[%s291 + $0x14] sm:$0xf]
      %v379 = vld [vmem:[%s291 + $0x18] sm:$0xf]
      %v380 = vld [vmem:[%s291 + $0x1c] sm:$0xf]
      %v381 = vld [vmem:[%s291 + $0x20] sm:$0xf]
      %v382 = vld [vmem:[%s291 + $0x24] sm:$0xf]
      %v383 = vld [vmem:[%s291 + $0x28] sm:$0xf]
      %v384 = vld [vmem:[%s291 + $0x2c] sm:$0xf]
      %v385 = vld [vmem:[%s291 + $0x30] sm:$0xf]
      %v386 = vld [vmem:[%s291 + $0x34] sm:$0xf]
      %v387 = vld [vmem:[%s291 + $0x38] sm:$0xf]
      %v388 = vld [vmem:[%s291 + $0x3c] sm:$0xf]
      %v389 = vld [vmem:[%s291 + $0x40] sm:$0xf]
      %v390 = vld [vmem:[%s291 + $0x44] sm:$0xf]
      %v391 = vld [vmem:[%s291 + $0x48] sm:$0xf]
      %v392 = vld [vmem:[%s291 + $0x4c] sm:$0xf]
      %v393 = vld [vmem:[%s291 + $0x50] sm:$0xf]
      %v394 = vld [vmem:[%s291 + $0x54] sm:$0xf]
      %v395 = vld [vmem:[%s291 + $0x58] sm:$0xf]
      %v396 = vld [vmem:[%s291 + $0x5c] sm:$0xf]
      %v397 = vld [vmem:[%s291 + $0x60] sm:$0xf]
      %v398 = vld [vmem:[%s291 + $0x64] sm:$0xf]
      %v399 = vld [vmem:[%s291 + $0x68] sm:$0xf]
      %v400 = vld [vmem:[%s291 + $0x6c] sm:$0xf]
      %v401 = vld [vmem:[%s291 + $0x70] sm:$0xf]
      %v402 = vld [vmem:[%s291 + $0x74] sm:$0xf]
      %v403 = vld [vmem:[%s291 + $0x78] sm:$0xf]
      %v404 = vld [vmem:[%s291 + $0x7c] sm:$0xf]
      %v469 = vunpack.c.l.b16 %v309
      %v470 = vunpack.c.h.b16 %v309
      %v471 = vunpack.c.l.b16 %v310
      %v472 = vunpack.c.h.b16 %v310
      %v473 = vunpack.c.l.b16 %v311
      %v474 = vunpack.c.h.b16 %v311
      %v475 = vunpack.c.l.b16 %v312
      %v476 = vunpack.c.h.b16 %v312
      %v477 = vunpack.c.l.b16 %v313
      %v478 = vunpack.c.h.b16 %v313
      %v479 = vunpack.c.l.b16 %v314
      %v480 = vunpack.c.h.b16 %v314
      %v481 = vunpack.c.l.b16 %v315
      %v482 = vunpack.c.h.b16 %v315
      %v483 = vunpack.c.l.b16 %v316
      %v484 = vunpack.c.h.b16 %v316
      %v485 = vunpack.c.l.b16 %v317
      %v486 = vunpack.c.h.b16 %v317
      %v487 = vunpack.c.l.b16 %v318
      %v488 = vunpack.c.h.b16 %v318
      %v489 = vunpack.c.l.b16 %v319
      %v490 = vunpack.c.h.b16 %v319
      %v491 = vunpack.c.l.b16 %v320
      %v492 = vunpack.c.h.b16 %v320
      %v493 = vunpack.c.l.b16 %v321
      %v494 = vunpack.c.h.b16 %v321
      %v495 = vunpack.c.l.b16 %v322
      %v496 = vunpack.c.h.b16 %v322
      %v497 = vunpack.c.l.b16 %v323
      %v498 = vunpack.c.h.b16 %v323
      %v499 = vunpack.c.l.b16 %v324
      %v500 = vunpack.c.h.b16 %v324
      %v501 = vunpack.c.l.b16 %v325
      %v502 = vunpack.c.h.b16 %v325
      %v503 = vunpack.c.l.b16 %v326
      %v504 = vunpack.c.h.b16 %v326
      %v505 = vunpack.c.l.b16 %v327
      %v506 = vunpack.c.h.b16 %v327
      %v507 = vunpack.c.l.b16 %v328
      %v508 = vunpack.c.h.b16 %v328
      %v509 = vunpack.c.l.b16 %v329
      %v510 = vunpack.c.h.b16 %v329
      %v511 = vunpack.c.l.b16 %v330
      %v512 = vunpack.c.h.b16 %v330
      %v513 = vunpack.c.l.b16 %v331
      %v514 = vunpack.c.h.b16 %v331
      %v515 = vunpack.c.l.b16 %v332
      %v516 = vunpack.c.h.b16 %v332
      %v517 = vunpack.c.l.b16 %v333
      %v518 = vunpack.c.h.b16 %v333
      %v519 = vunpack.c.l.b16 %v334
      %v520 = vunpack.c.h.b16 %v334
      %v521 = vunpack.c.l.b16 %v335
      %v522 = vunpack.c.h.b16 %v335
      %v523 = vunpack.c.l.b16 %v336
      %v524 = vunpack.c.h.b16 %v336
      %v525 = vunpack.c.l.b16 %v337
      %v526 = vunpack.c.h.b16 %v337
      %v527 = vunpack.c.l.b16 %v338
      %v528 = vunpack.c.h.b16 %v338
      %v529 = vunpack.c.l.b16 %v339
      %v530 = vunpack.c.h.b16 %v339
      %v531 = vunpack.c.l.b16 %v340
      %v532 = vunpack.c.h.b16 %v340
      %v533 = vunpack.c.l.b16 %v341
      %v534 = vunpack.c.h.b16 %v341
      %v535 = vunpack.c.l.b16 %v342
      %v536 = vunpack.c.h.b16 %v342
      %v537 = vunpack.c.l.b16 %v343
      %v538 = vunpack.c.h.b16 %v343
      %v539 = vunpack.c.l.b16 %v344
      %v540 = vunpack.c.h.b16 %v344
      %v541 = vunpack.c.l.b16 %v345
      %v542 = vunpack.c.h.b16 %v345
      %v543 = vunpack.c.l.b16 %v346
      %v544 = vunpack.c.h.b16 %v346
      %v545 = vunpack.c.l.b16 %v347
      %v546 = vunpack.c.h.b16 %v347
      %v547 = vunpack.c.l.b16 %v348
      %v548 = vunpack.c.h.b16 %v348
      %v549 = vunpack.c.l.b16 %v349
      %v550 = vunpack.c.h.b16 %v349
      %v551 = vunpack.c.l.b16 %v350
      %v552 = vunpack.c.h.b16 %v350
      %v553 = vunpack.c.l.b16 %v351
      %v554 = vunpack.c.h.b16 %v351
      %v555 = vunpack.c.l.b16 %v352
      %v556 = vunpack.c.h.b16 %v352
      %v557 = vunpack.c.l.b16 %v353
      %v558 = vunpack.c.h.b16 %v353
      %v559 = vunpack.c.l.b16 %v354
      %v560 = vunpack.c.h.b16 %v354
      %v561 = vunpack.c.l.b16 %v355
      %v562 = vunpack.c.h.b16 %v355
      %v563 = vunpack.c.l.b16 %v356
      %v564 = vunpack.c.h.b16 %v356
      %v565 = vunpack.c.l.b16 %v357
      %v566 = vunpack.c.h.b16 %v357
      %v567 = vunpack.c.l.b16 %v358
      %v568 = vunpack.c.h.b16 %v358
      %v569 = vunpack.c.l.b16 %v359
      %v570 = vunpack.c.h.b16 %v359
      %v571 = vunpack.c.l.b16 %v360
      %v572 = vunpack.c.h.b16 %v360
      %v573 = vunpack.c.l.b16 %v361
      %v574 = vunpack.c.h.b16 %v361
      %v575 = vunpack.c.l.b16 %v362
      %v576 = vunpack.c.h.b16 %v362
      %v577 = vunpack.c.l.b16 %v363
      %v578 = vunpack.c.h.b16 %v363
      %v579 = vunpack.c.l.b16 %v364
      %v580 = vunpack.c.h.b16 %v364
      %v581 = vunpack.c.l.b16 %v365
      %v582 = vunpack.c.h.b16 %v365
      %v583 = vunpack.c.l.b16 %v366
      %v584 = vunpack.c.h.b16 %v366
      %v585 = vunpack.c.l.b16 %v367
      %v586 = vunpack.c.h.b16 %v367
      %v587 = vunpack.c.l.b16 %v368
      %v588 = vunpack.c.h.b16 %v368
      %v589 = vunpack.c.l.b16 %v369
      %v590 = vunpack.c.h.b16 %v369
      %v591 = vunpack.c.l.b16 %v370
      %v592 = vunpack.c.h.b16 %v370
      %v593 = vunpack.c.l.b16 %v371
      %v594 = vunpack.c.h.b16 %v371
      %v595 = vunpack.c.l.b16 %v372
      %v596 = vunpack.c.h.b16 %v372
      %v597 = vpack.c.b16 %v471, %v469
      %v598 = vpack.c.b16 %v472, %v470
      %v599 = vpack.c.b16 %v475, %v473
      %v600 = vpack.c.b16 %v476, %v474
      %v601 = vpack.c.b16 %v479, %v477
      %v602 = vpack.c.b16 %v480, %v478
      %v603 = vpack.c.b16 %v483, %v481
      %v604 = vpack.c.b16 %v484, %v482
      %v605 = vpack.c.b16 %v487, %v485
      %v606 = vpack.c.b16 %v488, %v486
      %v607 = vpack.c.b16 %v491, %v489
      %v608 = vpack.c.b16 %v492, %v490
      %v609 = vpack.c.b16 %v495, %v493
      %v610 = vpack.c.b16 %v496, %v494
      %v611 = vpack.c.b16 %v499, %v497
      %v612 = vpack.c.b16 %v500, %v498
      %v613 = vpack.c.b16 %v503, %v501
      %v614 = vpack.c.b16 %v504, %v502
      %v615 = vpack.c.b16 %v507, %v505
      %v616 = vpack.c.b16 %v508, %v506
      %v617 = vpack.c.b16 %v511, %v509
      %v618 = vpack.c.b16 %v512, %v510
      %v619 = vpack.c.b16 %v515, %v513
      %v620 = vpack.c.b16 %v516, %v514
      %v621 = vpack.c.b16 %v519, %v517
      %v622 = vpack.c.b16 %v520, %v518
      %v623 = vpack.c.b16 %v523, %v521
      %v624 = vpack.c.b16 %v524, %v522
      %v625 = vpack.c.b16 %v527, %v525
      %v626 = vpack.c.b16 %v528, %v526
      %v627 = vpack.c.b16 %v531, %v529
      %v628 = vpack.c.b16 %v532, %v530
      %v629 = vpack.c.b16 %v535, %v533
      %v630 = vpack.c.b16 %v536, %v534
      %v631 = vpack.c.b16 %v539, %v537
      %v632 = vpack.c.b16 %v540, %v538
      %v633 = vpack.c.b16 %v543, %v541
      %v634 = vpack.c.b16 %v544, %v542
      %v635 = vpack.c.b16 %v547, %v545
      %v636 = vpack.c.b16 %v548, %v546
      %v637 = vpack.c.b16 %v551, %v549
      %v638 = vpack.c.b16 %v552, %v550
      %v639 = vpack.c.b16 %v555, %v553
      %v640 = vpack.c.b16 %v556, %v554
      %v641 = vpack.c.b16 %v559, %v557
      %v642 = vpack.c.b16 %v560, %v558
      %v643 = vpack.c.b16 %v563, %v561
      %v644 = vpack.c.b16 %v564, %v562
      %v645 = vpack.c.b16 %v567, %v565
      %v646 = vpack.c.b16 %v568, %v566
      %v647 = vpack.c.b16 %v571, %v569
      %v648 = vpack.c.b16 %v572, %v570
      %v649 = vpack.c.b16 %v575, %v573
      %v650 = vpack.c.b16 %v576, %v574
      %v651 = vpack.c.b16 %v579, %v577
      %v652 = vpack.c.b16 %v580, %v578
      %v653 = vpack.c.b16 %v583, %v581
      %v654 = vpack.c.b16 %v584, %v582
      %v655 = vpack.c.b16 %v587, %v585
      %v656 = vpack.c.b16 %v588, %v586
      %v657 = vpack.c.b16 %v591, %v589
      %v658 = vpack.c.b16 %v592, %v590
      %v659 = vpack.c.b16 %v595, %v593
      %v660 = vpack.c.b16 %v596, %v594
      %v757 = vunpack.c.l.b16 %v373
      %v758 = vunpack.c.l.b16 %v374
      %v759 = vunpack.c.l.b16 %v375
      %v760 = vunpack.c.l.b16 %v376
      %v761 = vunpack.c.l.b16 %v377
      %v762 = vunpack.c.l.b16 %v378
      %v763 = vunpack.c.l.b16 %v379
      %v764 = vunpack.c.l.b16 %v380
      %v765 = vunpack.c.l.b16 %v381
      %v766 = vunpack.c.l.b16 %v382
      %v767 = vunpack.c.l.b16 %v383
      %v768 = vunpack.c.l.b16 %v384
      %v769 = vunpack.c.l.b16 %v385
      %v770 = vunpack.c.l.b16 %v386
      %v771 = vunpack.c.l.b16 %v387
      %v772 = vunpack.c.l.b16 %v388
      %v773 = vunpack.c.l.b16 %v389
      %v774 = vunpack.c.l.b16 %v390
      %v775 = vunpack.c.l.b16 %v391
      %v776 = vunpack.c.l.b16 %v392
      %v777 = vunpack.c.l.b16 %v393
      %v778 = vunpack.c.l.b16 %v394
      %v779 = vunpack.c.l.b16 %v395
      %v780 = vunpack.c.l.b16 %v396
      %v781 = vunpack.c.l.b16 %v397
      %v782 = vunpack.c.l.b16 %v398
      %v783 = vunpack.c.l.b16 %v399
      %v784 = vunpack.c.l.b16 %v400
      %v785 = vunpack.c.l.b16 %v401
      %v786 = vunpack.c.l.b16 %v402
      %v787 = vunpack.c.l.b16 %v403
      %v788 = vunpack.c.l.b16 %v404
      %v789 = vpack.c.b16 %v758, %v757
      %v790 = vpack.c.b16 %v760, %v759
      %v791 = vpack.c.b16 %v762, %v761
      %v792 = vpack.c.b16 %v764, %v763
      %v793 = vpack.c.b16 %v766, %v765
      %v794 = vpack.c.b16 %v768, %v767
      %v795 = vpack.c.b16 %v770, %v769
      %v796 = vpack.c.b16 %v772, %v771
      %v797 = vpack.c.b16 %v774, %v773
      %v798 = vpack.c.b16 %v776, %v775
      %v799 = vpack.c.b16 %v778, %v777
      %v800 = vpack.c.b16 %v780, %v779
      %v801 = vpack.c.b16 %v782, %v781
      %v802 = vpack.c.b16 %v784, %v783
      %v803 = vpack.c.b16 %v786, %v785
      %v804 = vpack.c.b16 %v788, %v787
      %821 = vmatprep.subr.bf16.mxu0 0
      %822 = vmatpush1.bf16.msra.mxu0 %v789
      %823 = vmatprep.subr.bf16.mxu0 0
      %824 = vmatpush1.bf16.msra.mxu0 %v790
      %825 = vmatprep.subr.bf16.mxu0 0
      %826 = vmatpush1.bf16.msra.mxu0 %v791
      %827 = vmatprep.subr.bf16.mxu0 0
      %828 = vmatpush1.bf16.msra.mxu0 %v792
      %829 = vmatprep.subr.bf16.mxu0 0
      %830 = vmatpush1.bf16.msra.mxu0 %v793
      %831 = vmatprep.subr.bf16.mxu0 0
      %832 = vmatpush1.bf16.msra.mxu0 %v794
      %833 = vmatprep.subr.bf16.mxu0 0
      %834 = vmatpush1.bf16.msra.mxu0 %v795
      %835 = vmatprep.subr.bf16.mxu0 0
      %836 = vmatpush1.bf16.msra.mxu0 %v796
      %837 = vmatprep.subr.bf16.mxu0 0
      %838 = vmatpush1.bf16.msra.mxu0 %v797
      %839 = vmatprep.subr.bf16.mxu0 0
      %840 = vmatpush1.bf16.msra.mxu0 %v798
      %841 = vmatprep.subr.bf16.mxu0 0
      %842 = vmatpush1.bf16.msra.mxu0 %v799
      %843 = vmatprep.subr.bf16.mxu0 0
      %844 = vmatpush1.bf16.msra.mxu0 %v800
      %845 = vmatprep.subr.bf16.mxu0 0
      %846 = vmatpush1.bf16.msra.mxu0 %v801
      %847 = vmatprep.subr.bf16.mxu0 0
      %848 = vmatpush1.bf16.msra.mxu0 %v802
      %849 = vmatprep.subr.bf16.mxu0 0
      %850 = vmatpush1.bf16.msra.mxu0 %v803
      %851 = vmatprep.subr.bf16.mxu0 0
      %852 = vmatpush1.bf16.msra.mxu0 %v804
      %853 = vmatprep.mubr.bf16.mxu0 %v598
      %854 = vmatmul.mubr.bf16.gmra.mrb[0].mxu0 %v597
      %v855 = vpop.f32.mrb[0].mxu0
      %v856 = vadd.f32 0.0, %v855
      %v857 = vpop.f32.mrb[0].mxu0
      %v858 = vpop.f32.mrb[0].mxu0
      %v859 = vadd.f32 0.0, %v858
      %v860 = vpop.f32.mrb[0].mxu0
      %861 = vmatprep.mubr.bf16.mxu0 %v600
      %862 = vmatmul.mubr.bf16.gmra.mrb[0].mxu0 %v599
      %v863 = vpop.f32.mrb[0].mxu0
      %v864 = vadd.f32 0.0, %v863
      %v865 = vpop.f32.mrb[0].mxu0
      %v866 = vpop.f32.mrb[0].mxu0
      %v867 = vadd.f32 0.0, %v866
      %v868 = vpop.f32.mrb[0].mxu0
      %869 = vmatprep.mubr.bf16.mxu0 %v602
      %870 = vmatmul.mubr.bf16.gmra.mrb[0].mxu0 %v601
      %v871 = vpop.f32.mrb[0].mxu0
      %v872 = vadd.f32 0.0, %v871
      %v873 = vpop.f32.mrb[0].mxu0
      %v874 = vpop.f32.mrb[0].mxu0
      %v875 = vadd.f32 0.0, %v874
      %v876 = vpop.f32.mrb[0].mxu0
      %877 = vmatprep.mubr.bf16.mxu0 %v604
      %878 = vmatmul.mubr.bf16.gmra.mrb[0].mxu0 %v603
      %v879 = vpop.f32.mrb[0].mxu0
      %v880 = vadd.f32 0.0, %v879
      %v881 = vpop.f32.mrb[0].mxu0
      %v882 = vpop.f32.mrb[0].mxu0
      %v883 = vadd.f32 0.0, %v882
      %v884 = vpop.f32.mrb[0].mxu0
      %885 = vmatprep.mubr.bf16.mxu0 %v606
      %886 = vmatmul.mubr.bf16.gmra.mrb[0].mxu0 %v605
      %v887 = vpop.f32.mrb[0].mxu0
      %v888 = vadd.f32 0.0, %v887
      %v889 = vpop.f32.mrb[0].mxu0
      %v890 = vpop.f32.mrb[0].mxu0
      %v891 = vadd.f32 0.0, %v890
      %v892 = vpop.f32.mrb[0].mxu0
      %893 = vmatprep.mubr.bf16.mxu0 %v608
      %894 = vmatmul.mubr.bf16.gmra.mrb[0].mxu0 %v607
      %v895 = vpop.f32.mrb[0].mxu0
      %v896 = vadd.f32 0.0, %v895
      %v897 = vpop.f32.mrb[0].mxu0
      %v898 = vpop.f32.mrb[0].mxu0
      %v899 = vadd.f32 0.0, %v898
      %v900 = vpop.f32.mrb[0].mxu0
      %901 = vmatprep.mubr.bf16.mxu0 %v610
      %902 = vmatmul.mubr.bf16.gmra.mrb[0].mxu0 %v609
      %v903 = vpop.f32.mrb[0].mxu0
      %v904 = vadd.f32 0.0, %v903
      %v905 = vpop.f32.mrb[0].mxu0
      %v906 = vpop.f32.mrb[0].mxu0
      %v907 = vadd.f32 0.0, %v906
      %v908 = vpop.f32.mrb[0].mxu0
      %909 = vmatprep.mubr.bf16.mxu0 %v612
      %910 = vmatmul.mubr.bf16.gmra.mrb[0].mxu0 %v611
      %v911 = vpop.f32.mrb[0].mxu0
      %v912 = vadd.f32 0.0, %v911
      %v913 = vpop.f32.mrb[0].mxu0
      %v914 = vpop.f32.mrb[0].mxu0
      %v915 = vadd.f32 0.0, %v914
      %v916 = vpop.f32.mrb[0].mxu0
      %917 = vmatprep.mubr.bf16.mxu0 %v614
      %918 = vmatmul.mubr.bf16.gmra.mrb[0].mxu0 %v613
      %v919 = vpop.f32.mrb[0].mxu0
      %v920 = vadd.f32 0.0, %v919
      %v921 = vpop.f32.mrb[0].mxu0
      %v922 = vpop.f32.mrb[0].mxu0
      %v923 = vadd.f32 0.0, %v922
      %v924 = vpop.f32.mrb[0].mxu0
      %925 = vmatprep.mubr.bf16.mxu0 %v616
      %926 = vmatmul.mubr.bf16.gmra.mrb[0].mxu0 %v615
      %v927 = vpop.f32.mrb[0].mxu0
      %v928 = vadd.f32 0.0, %v927
      %v929 = vpop.f32.mrb[0].mxu0
      %v930 = vpop.f32.mrb[0].mxu0
      %v931 = vadd.f32 0.0, %v930
      %v932 = vpop.f32.mrb[0].mxu0
      %933 = vmatprep.mubr.bf16.mxu0 %v618
      %934 = vmatmul.mubr.bf16.gmra.mrb[0].mxu0 %v617
      %v935 = vpop.f32.mrb[0].mxu0
      %v936 = vadd.f32 0.0, %v935
      %v937 = vpop.f32.mrb[0].mxu0
      %v938 = vpop.f32.mrb[0].mxu0
      %v939 = vadd.f32 0.0, %v938
      %v940 = vpop.f32.mrb[0].mxu0
      %941 = vmatprep.mubr.bf16.mxu0 %v620
      %942 = vmatmul.mubr.bf16.gmra.mrb[0].mxu0 %v619
      %v943 = vpop.f32.mrb[0].mxu0
      %v944 = vadd.f32 0.0, %v943
      %v945 = vpop.f32.mrb[0].mxu0
      %v946 = vpop.f32.mrb[0].mxu0
      %v947 = vadd.f32 0.0, %v946
      %v948 = vpop.f32.mrb[0].mxu0
      %949 = vmatprep.mubr.bf16.mxu0 %v622
      %950 = vmatmul.mubr.bf16.gmra.mrb[0].mxu0 %v621
      %v951 = vpop.f32.mrb[0].mxu0
      %v952 = vadd.f32 0.0, %v951
      %v953 = vpop.f32.mrb[0].mxu0
      %v954 = vpop.f32.mrb[0].mxu0
      %v955 = vadd.f32 0.0, %v954
      %v956 = vpop.f32.mrb[0].mxu0
      %957 = vmatprep.mubr.bf16.mxu0 %v624
      %958 = vmatmul.mubr.bf16.gmra.mrb[0].mxu0 %v623
      %v959 = vpop.f32.mrb[0].mxu0
      %v960 = vadd.f32 0.0, %v959
      %v961 = vpop.f32.mrb[0].mxu0
      %v962 = vpop.f32.mrb[0].mxu0
      %v963 = vadd.f32 0.0, %v962
      %v964 = vpop.f32.mrb[0].mxu0
      %965 = vmatprep.mubr.bf16.mxu0 %v626
      %966 = vmatmul.mubr.bf16.gmra.mrb[0].mxu0 %v625
      %v967 = vpop.f32.mrb[0].mxu0
      %v968 = vadd.f32 0.0, %v967
      %v969 = vpop.f32.mrb[0].mxu0
      %v970 = vpop.f32.mrb[0].mxu0
      %v971 = vadd.f32 0.0, %v970
      %v972 = vpop.f32.mrb[0].mxu0
      %973 = vmatprep.mubr.bf16.mxu0 %v628
      %974 = vmatmul.mubr.bf16.gmra.mrb[0].mxu0 %v627
      %v975 = vpop.f32.mrb[0].mxu0
      %v976 = vadd.f32 0.0, %v975
      %v977 = vpop.f32.mrb[0].mxu0
      %v978 = vpop.f32.mrb[0].mxu0
      %v979 = vadd.f32 0.0, %v978
      %v980 = vpop.f32.mrb[0].mxu0
      %981 = vmatprep.mubr.bf16.mxu0 %v630
      %982 = vmatmul.mubr.bf16.gmra.mrb[0].mxu0 %v629
      %v983 = vpop.f32.mrb[0].mxu0
      %v984 = vadd.f32 0.0, %v983
      %v985 = vpop.f32.mrb[0].mxu0
      %v986 = vpop.f32.mrb[0].mxu0
      %v987 = vadd.f32 0.0, %v986
      %v988 = vpop.f32.mrb[0].mxu0
      %989 = vmatprep.mubr.bf16.mxu0 %v632
      %990 = vmatmul.mubr.bf16.gmra.mrb[0].mxu0 %v631
      %v991 = vpop.f32.mrb[0].mxu0
      %v992 = vadd.f32 0.0, %v991
      %v993 = vpop.f32.mrb[0].mxu0
      %v994 = vpop.f32.mrb[0].mxu0
      %v995 = vadd.f32 0.0, %v994
      %v996 = vpop.f32.mrb[0].mxu0
      %997 = vmatprep.mubr.bf16.mxu0 %v634
      %998 = vmatmul.mubr.bf16.gmra.mrb[0].mxu0 %v633
      %v999 = vpop.f32.mrb[0].mxu0
      %v1000 = vadd.f32 0.0, %v999
      %v1001 = vpop.f32.mrb[0].mxu0
      %v1002 = vpop.f32.mrb[0].mxu0
      %v1003 = vadd.f32 0.0, %v1002
      %v1004 = vpop.f32.mrb[0].mxu0
      %1005 = vmatprep.mubr.bf16.mxu0 %v636
      %1006 = vmatmul.mubr.bf16.gmra.mrb[0].mxu0 %v635
      %v1007 = vpop.f32.mrb[0].mxu0
      %v1008 = vadd.f32 0.0, %v1007
      %v1009 = vpop.f32.mrb[0].mxu0
      %v1010 = vpop.f32.mrb[0].mxu0
      %v1011 = vadd.f32 0.0, %v1010
      %v1012 = vpop.f32.mrb[0].mxu0
      %1013 = vmatprep.mubr.bf16.mxu0 %v638
      %1014 = vmatmul.mubr.bf16.gmra.mrb[0].mxu0 %v637
      %v1015 = vpop.f32.mrb[0].mxu0
      %v1016 = vadd.f32 0.0, %v1015
      %v1017 = vpop.f32.mrb[0].mxu0
      %v1018 = vpop.f32.mrb[0].mxu0
      %v1019 = vadd.f32 0.0, %v1018
      %v1020 = vpop.f32.mrb[0].mxu0
      %1021 = vmatprep.mubr.bf16.mxu0 %v640
      %1022 = vmatmul.mubr.bf16.gmra.mrb[0].mxu0 %v639
      %v1023 = vpop.f32.mrb[0].mxu0
      %v1024 = vadd.f32 0.0, %v1023
      %v1025 = vpop.f32.mrb[0].mxu0
      %v1026 = vpop.f32.mrb[0].mxu0
      %v1027 = vadd.f32 0.0, %v1026
      %v1028 = vpop.f32.mrb[0].mxu0
      %1029 = vmatprep.mubr.bf16.mxu0 %v642
      %1030 = vmatmul.mubr.bf16.gmra.mrb[0].mxu0 %v641
      %v1031 = vpop.f32.mrb[0].mxu0
      %v1032 = vadd.f32 0.0, %v1031
      %v1033 = vpop.f32.mrb[0].mxu0
      %v1034 = vpop.f32.mrb[0].mxu0
      %v1035 = vadd.f32 0.0, %v1034
      %v1036 = vpop.f32.mrb[0].mxu0
      %1037 = vmatprep.mubr.bf16.mxu0 %v644
      %1038 = vmatmul.mubr.bf16.gmra.mrb[0].mxu0 %v643
      %v1039 = vpop.f32.mrb[0].mxu0
      %v1040 = vadd.f32 0.0, %v1039
      %v1041 = vpop.f32.mrb[0].mxu0
      %v1042 = vpop.f32.mrb[0].mxu0
      %v1043 = vadd.f32 0.0, %v1042
      %v1044 = vpop.f32.mrb[0].mxu0
      %1045 = vmatprep.mubr.bf16.mxu0 %v646
      %1046 = vmatmul.mubr.bf16.gmra.mrb[0].mxu0 %v645
      %v1047 = vpop.f32.mrb[0].mxu0
      %v1048 = vadd.f32 0.0, %v1047
      %v1049 = vpop.f32.mrb[0].mxu0
      %v1050 = vpop.f32.mrb[0].mxu0
      %v1051 = vadd.f32 0.0, %v1050
      %v1052 = vpop.f32.mrb[0].mxu0
      %1053 = vmatprep.mubr.bf16.mxu0 %v648
      %1054 = vmatmul.mubr.bf16.gmra.mrb[0].mxu0 %v647
      %v1055 = vpop.f32.mrb[0].mxu0
      %v1056 = vadd.f32 0.0, %v1055
      %v1057 = vpop.f32.mrb[0].mxu0
      %v1058 = vpop.f32.mrb[0].mxu0
      %v1059 = vadd.f32 0.0, %v1058
      %v1060 = vpop.f32.mrb[0].mxu0
      %1061 = vmatprep.mubr.bf16.mxu0 %v650
      %1062 = vmatmul.mubr.bf16.gmra.mrb[0].mxu0 %v649
      %v1063 = vpop.f32.mrb[0].mxu0
      %v1064 = vadd.f32 0.0, %v1063
      %v1065 = vpop.f32.mrb[0].mxu0
      %v1066 = vpop.f32.mrb[0].mxu0
      %v1067 = vadd.f32 0.0, %v1066
      %v1068 = vpop.f32.mrb[0].mxu0
      %1069 = vmatprep.mubr.bf16.mxu0 %v652
      %1070 = vmatmul.mubr.bf16.gmra.mrb[0].mxu0 %v651
      %v1071 = vpop.f32.mrb[0].mxu0
      %v1072 = vadd.f32 0.0, %v1071
      %v1073 = vpop.f32.mrb[0].mxu0
      %v1074 = vpop.f32.mrb[0].mxu0
      %v1075 = vadd.f32 0.0, %v1074
      %v1076 = vpop.f32.mrb[0].mxu0
      %1077 = vmatprep.mubr.bf16.mxu0 %v654
      %1078 = vmatmul.mubr.bf16.gmra.mrb[0].mxu0 %v653
      %v1079 = vpop.f32.mrb[0].mxu0
      %v1080 = vadd.f32 0.0, %v1079
      %v1081 = vpop.f32.mrb[0].mxu0
      %v1082 = vpop.f32.mrb[0].mxu0
      %v1083 = vadd.f32 0.0, %v1082
      %v1084 = vpop.f32.mrb[0].mxu0
      %1085 = vmatprep.mubr.bf16.mxu0 %v656
      %1086 = vmatmul.mubr.bf16.gmra.mrb[0].mxu0 %v655
      %v1087 = vpop.f32.mrb[0].mxu0
      %v1088 = vadd.f32 0.0, %v1087
      %v1089 = vpop.f32.mrb[0].mxu0
      %v1090 = vpop.f32.mrb[0].mxu0
      %v1091 = vadd.f32 0.0, %v1090
      %v1092 = vpop.f32.mrb[0].mxu0
      %1093 = vmatprep.mubr.bf16.mxu0 %v658
      %1094 = vmatmul.mubr.bf16.gmra.mrb[0].mxu0 %v657
      %v1095 = vpop.f32.mrb[0].mxu0
      %v1096 = vadd.f32 0.0, %v1095
      %v1097 = vpop.f32.mrb[0].mxu0
      %v1098 = vpop.f32.mrb[0].mxu0
      %v1099 = vadd.f32 0.0, %v1098
      %v1100 = vpop.f32.mrb[0].mxu0
      %1101 = vmatprep.mubr.bf16.mxu0 %v660
      %1102 = vmatmul.mubr.bf16.gmra.mrb[0].mxu0 %v659
      %v1103 = vpop.f32.mrb[0].mxu0
      %v1104 = vadd.f32 0.0, %v1103
      %v1105 = vpop.f32.mrb[0].mxu0
      %v1106 = vpop.f32.mrb[0].mxu0
      %v1107 = vadd.f32 0.0, %v1106
      %v1108 = vpop.f32.mrb[0].mxu0
      %1109 = vdwg.mxu0
      %v1110 = vld [vmem:[%s295] sm:$0x1]
      %v1112 = vlaneseq
      %v1113 = vshrl.u32 %v1112, 7
      %v1114 = vsub.s32 0, %v1113
      %v1115 = vrot.slane %v1110, %v1114
      %v1117 = vmul.f32 %v856, %v1115
      %v1118 = vmul.f32 %v859, %v1115
      %v1119 = vmul.f32 %v864, %v1115
      %v1120 = vmul.f32 %v867, %v1115
      %v1121 = vmul.f32 %v872, %v1115
      %v1122 = vmul.f32 %v875, %v1115
      %v1123 = vmul.f32 %v880, %v1115
      %v1124 = vmul.f32 %v883, %v1115
      %v1125 = vmul.f32 %v888, %v1115
      %v1126 = vmul.f32 %v891, %v1115
      %v1127 = vmul.f32 %v896, %v1115
      %v1128 = vmul.f32 %v899, %v1115
      %v1129 = vmul.f32 %v904, %v1115
      %v1130 = vmul.f32 %v907, %v1115
      %v1131 = vmul.f32 %v912, %v1115
      %v1132 = vmul.f32 %v915, %v1115
      %v1133 = vmul.f32 %v920, %v1115
      %v1134 = vmul.f32 %v923, %v1115
      %v1135 = vmul.f32 %v928, %v1115
      %v1136 = vmul.f32 %v931, %v1115
      %v1137 = vmul.f32 %v936, %v1115
      %v1138 = vmul.f32 %v939, %v1115
      %v1139 = vmul.f32 %v944, %v1115
      %v1140 = vmul.f32 %v947, %v1115
      %v1141 = vmul.f32 %v952, %v1115
      %v1142 = vmul.f32 %v955, %v1115
      %v1143 = vmul.f32 %v960, %v1115
      %v1144 = vmul.f32 %v963, %v1115
      %v1145 = vmul.f32 %v968, %v1115
      %v1146 = vmul.f32 %v971, %v1115
      %v1147 = vmul.f32 %v976, %v1115
      %v1148 = vmul.f32 %v979, %v1115
      %v1149 = vmul.f32 %v984, %v1115
      %v1150 = vmul.f32 %v987, %v1115
      %v1151 = vmul.f32 %v992, %v1115
      %v1152 = vmul.f32 %v995, %v1115
      %v1153 = vmul.f32 %v1000, %v1115
      %v1154 = vmul.f32 %v1003, %v1115
      %v1155 = vmul.f32 %v1008, %v1115
      %v1156 = vmul.f32 %v1011, %v1115
      %v1157 = vmul.f32 %v1016, %v1115
      %v1158 = vmul.f32 %v1019, %v1115
      %v1159 = vmul.f32 %v1024, %v1115
      %v1160 = vmul.f32 %v1027, %v1115
      %v1161 = vmul.f32 %v1032, %v1115
      %v1162 = vmul.f32 %v1035, %v1115
      %v1163 = vmul.f32 %v1040, %v1115
      %v1164 = vmul.f32 %v1043, %v1115
      %v1165 = vmul.f32 %v1048, %v1115
      %v1166 = vmul.f32 %v1051, %v1115
      %v1167 = vmul.f32 %v1056, %v1115
      %v1168 = vmul.f32 %v1059, %v1115
      %v1169 = vmul.f32 %v1064, %v1115
      %v1170 = vmul.f32 %v1067, %v1115
      %v1171 = vmul.f32 %v1072, %v1115
      %v1172 = vmul.f32 %v1075, %v1115
      %v1173 = vmul.f32 %v1080, %v1115
      %v1174 = vmul.f32 %v1083, %v1115
      %v1175 = vmul.f32 %v1088, %v1115
      %v1176 = vmul.f32 %v1091, %v1115
      %v1177 = vmul.f32 %v1096, %v1115
      %v1178 = vmul.f32 %v1099, %v1115
      %v1179 = vmul.f32 %v1104, %v1115
      %v1180 = vmul.f32 %v1107, %v1115
      %v1181 = vld [vmem:[%s298] sm:$0x1]
      %v1183 = vlaneseq
      %v1184 = vshrl.u32 %v1183, 7
      %v1185 = vsub.s32 0, %v1184
      %v1186 = vrot.slane %v1181, %v1185
      %v1188 = vadd.f32 %v1117, %v1186
      %v1189 = vadd.f32 %v1118, %v1186
      %v1190 = vadd.f32 %v1119, %v1186
      %v1191 = vadd.f32 %v1120, %v1186
      %v1192 = vadd.f32 %v1121, %v1186
      %v1193 = vadd.f32 %v1122, %v1186
      %v1194 = vadd.f32 %v1123, %v1186
      %v1195 = vadd.f32 %v1124, %v1186
      %v1196 = vadd.f32 %v1125, %v1186
      %v1197 = vadd.f32 %v1126, %v1186
      %v1198 = vadd.f32 %v1127, %v1186
      %v1199 = vadd.f32 %v1128, %v1186
      %v1200 = vadd.f32 %v1129, %v1186
      %v1201 = vadd.f32 %v1130, %v1186
      %v1202 = vadd.f32 %v1131, %v1186
      %v1203 = vadd.f32 %v1132, %v1186
      %v1204 = vadd.f32 %v1133, %v1186
      %v1205 = vadd.f32 %v1134, %v1186
      %v1206 = vadd.f32 %v1135, %v1186
      %v1207 = vadd.f32 %v1136, %v1186
      %v1208 = vadd.f32 %v1137, %v1186
      %v1209 = vadd.f32 %v1138, %v1186
      %v1210 = vadd.f32 %v1139, %v1186
      %v1211 = vadd.f32 %v1140, %v1186
      %v1212 = vadd.f32 %v1141, %v1186
      %v1213 = vadd.f32 %v1142, %v1186
      %v1214 = vadd.f32 %v1143, %v1186
      %v1215 = vadd.f32 %v1144, %v1186
      %v1216 = vadd.f32 %v1145, %v1186
      %v1217 = vadd.f32 %v1146, %v1186
      %v1218 = vadd.f32 %v1147, %v1186
      %v1219 = vadd.f32 %v1148, %v1186
      %v1220 = vadd.f32 %v1149, %v1186
      %v1221 = vadd.f32 %v1150, %v1186
      %v1222 = vadd.f32 %v1151, %v1186
      %v1223 = vadd.f32 %v1152, %v1186
      %v1224 = vadd.f32 %v1153, %v1186
      %v1225 = vadd.f32 %v1154, %v1186
      %v1226 = vadd.f32 %v1155, %v1186
      %v1227 = vadd.f32 %v1156, %v1186
      %v1228 = vadd.f32 %v1157, %v1186
      %v1229 = vadd.f32 %v1158, %v1186
      %v1230 = vadd.f32 %v1159, %v1186
      %v1231 = vadd.f32 %v1160, %v1186
      %v1232 = vadd.f32 %v1161, %v1186
      %v1233 = vadd.f32 %v1162, %v1186
      %v1234 = vadd.f32 %v1163, %v1186
      %v1235 = vadd.f32 %v1164, %v1186
      %v1236 = vadd.f32 %v1165, %v1186
      %v1237 = vadd.f32 %v1166, %v1186
      %v1238 = vadd.f32 %v1167, %v1186
      %v1239 = vadd.f32 %v1168, %v1186
      %v1240 = vadd.f32 %v1169, %v1186
      %v1241 = vadd.f32 %v1170, %v1186
      %v1242 = vadd.f32 %v1171, %v1186
      %v1243 = vadd.f32 %v1172, %v1186
      %v1244 = vadd.f32 %v1173, %v1186
      %v1245 = vadd.f32 %v1174, %v1186
      %v1246 = vadd.f32 %v1175, %v1186
      %v1247 = vadd.f32 %v1176, %v1186
      %v1248 = vadd.f32 %v1177, %v1186
      %v1249 = vadd.f32 %v1178, %v1186
      %v1250 = vadd.f32 %v1179, %v1186
      %v1251 = vadd.f32 %v1180, %v1186
      %v1252 = vmax.f32 %v1188, 0.0
      %v1253 = vmax.f32 %v1189, 0.0
      %v1254 = vmax.f32 %v1190, 0.0
      %v1255 = vmax.f32 %v1191, 0.0
      %v1256 = vmax.f32 %v1192, 0.0
      %v1257 = vmax.f32 %v1193, 0.0
      %v1258 = vmax.f32 %v1194, 0.0
      %v1259 = vmax.f32 %v1195, 0.0
      %v1260 = vmax.f32 %v1196, 0.0
      %v1261 = vmax.f32 %v1197, 0.0
      %v1262 = vmax.f32 %v1198, 0.0
      %v1263 = vmax.f32 %v1199, 0.0
      %v1264 = vmax.f32 %v1200, 0.0
      %v1265 = vmax.f32 %v1201, 0.0
      %v1266 = vmax.f32 %v1202, 0.0
      %v1267 = vmax.f32 %v1203, 0.0
      %v1268 = vmax.f32 %v1204, 0.0
      %v1269 = vmax.f32 %v1205, 0.0
      %v1270 = vmax.f32 %v1206, 0.0
      %v1271 = vmax.f32 %v1207, 0.0
      %v1272 = vmax.f32 %v1208, 0.0
      %v1273 = vmax.f32 %v1209, 0.0
      %v1274 = vmax.f32 %v1210, 0.0
      %v1275 = vmax.f32 %v1211, 0.0
      %v1276 = vmax.f32 %v1212, 0.0
      %v1277 = vmax.f32 %v1213, 0.0
      %v1278 = vmax.f32 %v1214, 0.0
      %v1279 = vmax.f32 %v1215, 0.0
      %v1280 = vmax.f32 %v1216, 0.0
      %v1281 = vmax.f32 %v1217, 0.0
      %v1282 = vmax.f32 %v1218, 0.0
      %v1283 = vmax.f32 %v1219, 0.0
      %v1284 = vmax.f32 %v1220, 0.0
      %v1285 = vmax.f32 %v1221, 0.0
      %v1286 = vmax.f32 %v1222, 0.0
      %v1287 = vmax.f32 %v1223, 0.0
      %v1288 = vmax.f32 %v1224, 0.0
      %v1289 = vmax.f32 %v1225, 0.0
      %v1290 = vmax.f32 %v1226, 0.0
      %v1291 = vmax.f32 %v1227, 0.0
      %v1292 = vmax.f32 %v1228, 0.0
      %v1293 = vmax.f32 %v1229, 0.0
      %v1294 = vmax.f32 %v1230, 0.0
      %v1295 = vmax.f32 %v1231, 0.0
      %v1296 = vmax.f32 %v1232, 0.0
      %v1297 = vmax.f32 %v1233, 0.0
      %v1298 = vmax.f32 %v1234, 0.0
      %v1299 = vmax.f32 %v1235, 0.0
      %v1300 = vmax.f32 %v1236, 0.0
      %v1301 = vmax.f32 %v1237, 0.0
      %v1302 = vmax.f32 %v1238, 0.0
      %v1303 = vmax.f32 %v1239, 0.0
      %v1304 = vmax.f32 %v1240, 0.0
      %v1305 = vmax.f32 %v1241, 0.0
      %v1306 = vmax.f32 %v1242, 0.0
      %v1307 = vmax.f32 %v1243, 0.0
      %v1308 = vmax.f32 %v1244, 0.0
      %v1309 = vmax.f32 %v1245, 0.0
      %v1310 = vmax.f32 %v1246, 0.0
      %v1311 = vmax.f32 %v1247, 0.0
      %v1312 = vmax.f32 %v1248, 0.0
      %v1313 = vmax.f32 %v1249, 0.0
      %v1314 = vmax.f32 %v1250, 0.0
      %v1315 = vmax.f32 %v1251, 0.0
      %v1316 = vpack.c.bf16 %v1253, %v1252
      %v1317 = vpack.c.bf16 %v1255, %v1254
      %v1318 = vpack.c.bf16 %v1257, %v1256
      %v1319 = vpack.c.bf16 %v1259, %v1258
      %v1320 = vpack.c.bf16 %v1261, %v1260
      %v1321 = vpack.c.bf16 %v1263, %v1262
      %v1322 = vpack.c.bf16 %v1265, %v1264
      %v1323 = vpack.c.bf16 %v1267, %v1266
      %v1324 = vpack.c.bf16 %v1269, %v1268
      %v1325 = vpack.c.bf16 %v1271, %v1270
      %v1326 = vpack.c.bf16 %v1273, %v1272
      %v1327 = vpack.c.bf16 %v1275, %v1274
      %v1328 = vpack.c.bf16 %v1277, %v1276
      %v1329 = vpack.c.bf16 %v1279, %v1278
      %v1330 = vpack.c.bf16 %v1281, %v1280
      %v1331 = vpack.c.bf16 %v1283, %v1282
      %v1332 = vpack.c.bf16 %v1285, %v1284
      %v1333 = vpack.c.bf16 %v1287, %v1286
      %v1334 = vpack.c.bf16 %v1289, %v1288
      %v1335 = vpack.c.bf16 %v1291, %v1290
      %v1336 = vpack.c.bf16 %v1293, %v1292
      %v1337 = vpack.c.bf16 %v1295, %v1294
      %v1338 = vpack.c.bf16 %v1297, %v1296
      %v1339 = vpack.c.bf16 %v1299, %v1298
      %v1340 = vpack.c.bf16 %v1301, %v1300
      %v1341 = vpack.c.bf16 %v1303, %v1302
      %v1342 = vpack.c.bf16 %v1305, %v1304
      %v1343 = vpack.c.bf16 %v1307, %v1306
      %v1344 = vpack.c.bf16 %v1309, %v1308
      %v1345 = vpack.c.bf16 %v1311, %v1310
      %v1346 = vpack.c.bf16 %v1313, %v1312
      %v1347 = vpack.c.bf16 %v1315, %v1314
      %v1380 = vunpack.c.l.b16 %v1316
      %v1381 = vunpack.c.h.b16 %v1316
      %v1382 = vunpack.c.l.b16 %v1317
      %v1383 = vunpack.c.h.b16 %v1317
      %v1384 = vunpack.c.l.b16 %v1318
      %v1385 = vunpack.c.h.b16 %v1318
      %v1386 = vunpack.c.l.b16 %v1319
      %v1387 = vunpack.c.h.b16 %v1319
      %v1388 = vunpack.c.l.b16 %v1320
      %v1389 = vunpack.c.h.b16 %v1320
      %v1390 = vunpack.c.l.b16 %v1321
      %v1391 = vunpack.c.h.b16 %v1321
      %v1392 = vunpack.c.l.b16 %v1322
      %v1393 = vunpack.c.h.b16 %v1322
      %v1394 = vunpack.c.l.b16 %v1323
      %v1395 = vunpack.c.h.b16 %v1323
      %v1396 = vunpack.c.l.b16 %v1324
      %v1397 = vunpack.c.h.b16 %v1324
      %v1398 = vunpack.c.l.b16 %v1325
      %v1399 = vunpack.c.h.b16 %v1325
      %v1400 = vunpack.c.l.b16 %v1326
      %v1401 = vunpack.c.h.b16 %v1326
      %v1402 = vunpack.c.l.b16 %v1327
      %v1403 = vunpack.c.h.b16 %v1327
      %v1404 = vunpack.c.l.b16 %v1328
      %v1405 = vunpack.c.h.b16 %v1328
      %v1406 = vunpack.c.l.b16 %v1329
      %v1407 = vunpack.c.h.b16 %v1329
      %v1408 = vunpack.c.l.b16 %v1330
      %v1409 = vunpack.c.h.b16 %v1330
      %v1410 = vunpack.c.l.b16 %v1331
      %v1411 = vunpack.c.h.b16 %v1331
      %v1412 = vunpack.c.l.b16 %v1332
      %v1413 = vunpack.c.h.b16 %v1332
      %v1414 = vunpack.c.l.b16 %v1333
      %v1415 = vunpack.c.h.b16 %v1333
      %v1416 = vunpack.c.l.b16 %v1334
      %v1417 = vunpack.c.h.b16 %v1334
      %v1418 = vunpack.c.l.b16 %v1335
      %v1419 = vunpack.c.h.b16 %v1335
      %v1420 = vunpack.c.l.b16 %v1336
      %v1421 = vunpack.c.h.b16 %v1336
      %v1422 = vunpack.c.l.b16 %v1337
      %v1423 = vunpack.c.h.b16 %v1337
      %v1424 = vunpack.c.l.b16 %v1338
      %v1425 = vunpack.c.h.b16 %v1338
      %v1426 = vunpack.c.l.b16 %v1339
      %v1427 = vunpack.c.h.b16 %v1339
      %v1428 = vunpack.c.l.b16 %v1340
      %v1429 = vunpack.c.h.b16 %v1340
      %v1430 = vunpack.c.l.b16 %v1341
      %v1431 = vunpack.c.h.b16 %v1341
      %v1432 = vunpack.c.l.b16 %v1342
      %v1433 = vunpack.c.h.b16 %v1342
      %v1434 = vunpack.c.l.b16 %v1343
      %v1435 = vunpack.c.h.b16 %v1343
      %v1436 = vunpack.c.l.b16 %v1344
      %v1437 = vunpack.c.h.b16 %v1344
      %v1438 = vunpack.c.l.b16 %v1345
      %v1439 = vunpack.c.h.b16 %v1345
      %v1440 = vunpack.c.l.b16 %v1346
      %v1441 = vunpack.c.h.b16 %v1346
      %v1442 = vunpack.c.l.b16 %v1347
      %v1443 = vunpack.c.h.b16 %v1347
      %v1444 = vpack.c.b16 %v1380, %v1380
      %v1445 = vpack.c.b16 %v1381, %v1381
      %v1446 = vpack.c.b16 %v1382, %v1382
      %v1447 = vpack.c.b16 %v1383, %v1383
      %v1448 = vpack.c.b16 %v1384, %v1384
      %v1449 = vpack.c.b16 %v1385, %v1385
      %v1450 = vpack.c.b16 %v1386, %v1386
      %v1451 = vpack.c.b16 %v1387, %v1387
      %v1452 = vpack.c.b16 %v1388, %v1388
      %v1453 = vpack.c.b16 %v1389, %v1389
      %v1454 = vpack.c.b16 %v1390, %v1390
      %v1455 = vpack.c.b16 %v1391, %v1391
      %v1456 = vpack.c.b16 %v1392, %v1392
      %v1457 = vpack.c.b16 %v1393, %v1393
      %v1458 = vpack.c.b16 %v1394, %v1394
      %v1459 = vpack.c.b16 %v1395, %v1395
      %v1460 = vpack.c.b16 %v1396, %v1396
      %v1461 = vpack.c.b16 %v1397, %v1397
      %v1462 = vpack.c.b16 %v1398, %v1398
      %v1463 = vpack.c.b16 %v1399, %v1399
      %v1464 = vpack.c.b16 %v1400, %v1400
      %v1465 = vpack.c.b16 %v1401, %v1401
      %v1466 = vpack.c.b16 %v1402, %v1402
      %v1467 = vpack.c.b16 %v1403, %v1403
      %v1468 = vpack.c.b16 %v1404, %v1404
      %v1469 = vpack.c.b16 %v1405, %v1405
      %v1470 = vpack.c.b16 %v1406, %v1406
      %v1471 = vpack.c.b16 %v1407, %v1407
      %v1472 = vpack.c.b16 %v1408, %v1408
      %v1473 = vpack.c.b16 %v1409, %v1409
      %v1474 = vpack.c.b16 %v1410, %v1410
      %v1475 = vpack.c.b16 %v1411, %v1411
      %v1476 = vpack.c.b16 %v1412, %v1412
      %v1477 = vpack.c.b16 %v1413, %v1413
      %v1478 = vpack.c.b16 %v1414, %v1414
      %v1479 = vpack.c.b16 %v1415, %v1415
      %v1480 = vpack.c.b16 %v1416, %v1416
      %v1481 = vpack.c.b16 %v1417, %v1417
      %v1482 = vpack.c.b16 %v1418, %v1418
      %v1483 = vpack.c.b16 %v1419, %v1419
      %v1484 = vpack.c.b16 %v1420, %v1420
      %v1485 = vpack.c.b16 %v1421, %v1421
      %v1486 = vpack.c.b16 %v1422, %v1422
      %v1487 = vpack.c.b16 %v1423, %v1423
      %v1488 = vpack.c.b16 %v1424, %v1424
      %v1489 = vpack.c.b16 %v1425, %v1425
      %v1490 = vpack.c.b16 %v1426, %v1426
      %v1491 = vpack.c.b16 %v1427, %v1427
      %v1492 = vpack.c.b16 %v1428, %v1428
      %v1493 = vpack.c.b16 %v1429, %v1429
      %v1494 = vpack.c.b16 %v1430, %v1430
      %v1495 = vpack.c.b16 %v1431, %v1431
      %v1496 = vpack.c.b16 %v1432, %v1432
      %v1497 = vpack.c.b16 %v1433, %v1433
      %v1498 = vpack.c.b16 %v1434, %v1434
      %v1499 = vpack.c.b16 %v1435, %v1435
      %v1500 = vpack.c.b16 %v1436, %v1436
      %v1501 = vpack.c.b16 %v1437, %v1437
      %v1502 = vpack.c.b16 %v1438, %v1438
      %v1503 = vpack.c.b16 %v1439, %v1439
      %v1504 = vpack.c.b16 %v1440, %v1440
      %v1505 = vpack.c.b16 %v1441, %v1441
      %v1506 = vpack.c.b16 %v1442, %v1442
      %v1507 = vpack.c.b16 %v1443, %v1443
      %1572 = vst [vmem:[%s306] sm:$0xf] %v1444
      %1573 = vst [vmem:[%s306 + $0x4] sm:$0xf] %v1445
      %1574 = vst [vmem:[%s306 + $0x8] sm:$0xf] %v1446
      %1575 = vst [vmem:[%s306 + $0xc] sm:$0xf] %v1447
      %1576 = vst [vmem:[%s306 + $0x10] sm:$0xf] %v1448
      %1577 = vst [vmem:[%s306 + $0x14] sm:$0xf] %v1449
      %1578 = vst [vmem:[%s306 + $0x18] sm:$0xf] %v1450
      %1579 = vst [vmem:[%s306 + $0x1c] sm:$0xf] %v1451
      %1580 = vst [vmem:[%s306 + $0x20] sm:$0xf] %v1452
      %1581 = vst [vmem:[%s306 + $0x24] sm:$0xf] %v1453
      %1582 = vst [vmem:[%s306 + $0x28] sm:$0xf] %v1454
      %1583 = vst [vmem:[%s306 + $0x2c] sm:$0xf] %v1455
      %1584 = vst [vmem:[%s306 + $0x30] sm:$0xf] %v1456
      %1585 = vst [vmem:[%s306 + $0x34] sm:$0xf] %v1457
      %1586 = vst [vmem:[%s306 + $0x38] sm:$0xf] %v1458
      %1587 = vst [vmem:[%s306 + $0x3c] sm:$0xf] %v1459
      %1588 = vst [vmem:[%s306 + $0x40] sm:$0xf] %v1460
      %1589 = vst [vmem:[%s306 + $0x44] sm:$0xf] %v1461
      %1590 = vst [vmem:[%s306 + $0x48] sm:$0xf] %v1462
      %1591 = vst [vmem:[%s306 + $0x4c] sm:$0xf] %v1463
      %1592 = vst [vmem:[%s306 + $0x50] sm:$0xf] %v1464
      %1593 = vst [vmem:[%s306 + $0x54] sm:$0xf] %v1465
      %1594 = vst [vmem:[%s306 + $0x58] sm:$0xf] %v1466
      %1595 = vst [vmem:[%s306 + $0x5c] sm:$0xf] %v1467
      %1596 = vst [vmem:[%s306 + $0x60] sm:$0xf] %v1468
      %1597 = vst [vmem:[%s306 + $0x64] sm:$0xf] %v1469
      %1598 = vst [vmem:[%s306 + $0x68] sm:$0xf] %v1470
      %1599 = vst [vmem:[%s306 + $0x6c] sm:$0xf] %v1471
      %1600 = vst [vmem:[%s306 + $0x70] sm:$0xf] %v1472
      %1601 = vst [vmem:[%s306 + $0x74] sm:$0xf] %v1473
      %1602 = vst [vmem:[%s306 + $0x78] sm:$0xf] %v1474
      %1603 = vst [vmem:[%s306 + $0x7c] sm:$0xf] %v1475
      %1604 = vst [vmem:[%s306 + $0x80] sm:$0xf] %v1476
      %1605 = vst [vmem:[%s306 + $0x84] sm:$0xf] %v1477
      %1606 = vst [vmem:[%s306 + $0x88] sm:$0xf] %v1478
      %1607 = vst [vmem:[%s306 + $0x8c] sm:$0xf] %v1479
      %1608 = vst [vmem:[%s306 + $0x90] sm:$0xf] %v1480
      %1609 = vst [vmem:[%s306 + $0x94] sm:$0xf] %v1481
      %1610 = vst [vmem:[%s306 + $0x98] sm:$0xf] %v1482
      %1611 = vst [vmem:[%s306 + $0x9c] sm:$0xf] %v1483
      %1612 = vst [vmem:[%s306 + $0xa0] sm:$0xf] %v1484
      %1613 = vst [vmem:[%s306 + $0xa4] sm:$0xf] %v1485
      %1614 = vst [vmem:[%s306 + $0xa8] sm:$0xf] %v1486
      %1615 = vst [vmem:[%s306 + $0xac] sm:$0xf] %v1487
      %1616 = vst [vmem:[%s306 + $0xb0] sm:$0xf] %v1488
      %1617 = vst [vmem:[%s306 + $0xb4] sm:$0xf] %v1489
      %1618 = vst [vmem:[%s306 + $0xb8] sm:$0xf] %v1490
      %1619 = vst [vmem:[%s306 + $0xbc] sm:$0xf] %v1491
      %1620 = vst [vmem:[%s306 + $0xc0] sm:$0xf] %v1492
      %1621 = vst [vmem:[%s306 + $0xc4] sm:$0xf] %v1493
      %1622 = vst [vmem:[%s306 + $0xc8] sm:$0xf] %v1494
      %1623 = vst [vmem:[%s306 + $0xcc] sm:$0xf] %v1495
      %1624 = vst [vmem:[%s306 + $0xd0] sm:$0xf] %v1496
      %1625 = vst [vmem:[%s306 + $0xd4] sm:$0xf] %v1497
      %1626 = vst [vmem:[%s306 + $0xd8] sm:$0xf] %v1498
      %1627 = vst [vmem:[%s306 + $0xdc] sm:$0xf] %v1499
      %1628 = vst [vmem:[%s306 + $0xe0] sm:$0xf] %v1500
      %1629 = vst [vmem:[%s306 + $0xe4] sm:$0xf] %v1501
      %1630 = vst [vmem:[%s306 + $0xe8] sm:$0xf] %v1502
      %1631 = vst [vmem:[%s306 + $0xec] sm:$0xf] %v1503
      %1632 = vst [vmem:[%s306 + $0xf0] sm:$0xf] %v1504
      %1633 = vst [vmem:[%s306 + $0xf4] sm:$0xf] %v1505
      %1634 = vst [vmem:[%s306 + $0xf8] sm:$0xf] %v1506
      %1635 = vst [vmem:[%s306 + $0xfc] sm:$0xf] %v1507
      %s1636 = smul.u32 64, %s20
      %p1637 = scmp.lt.s32.totalorder %s1636, 255
      %s1638 = scalar_select %p1637, %s1636, 255
      %p1639 = scmp.lt.s32.totalorder %s21, 0
      %s1640 = scalar_select %p1639, %s21, 0
      %s1641 = sadd.s32 %s1640, %s1638
      %s1642 = smul.addr %s1641, 4
      %s1643 = scalar_lea.vmem %s4, %s1642
      // Predicated region
      $region37: #{matmul_bn.1} parent=35 // pred_check
        %p1644 = pneg %p162
      $region38: #{matmul_bn.1} parent=35 // pred_check_branch
        %1646 = sbr.rel (%p1644) target = $region40
      $region39: #{matmul_bn.1} parent=35 // pred_region
        %s1647 = smul.u32 64, %s20
      $region40: #{matmul_bn.1} parent=35 // pred_fallthru
        _
    $region36: #{matmul_bn.1} parent=5 // pred_fallthru
      _
    %p1648 = scmp.le.s32.totalorder 2, %s10
    // Predicated region
    $region41: #{matmul_bn.1} parent=5 // pred_check
      %p1649 = pneg %p1648
    $region42: #{matmul_bn.1} parent=5 // pred_check_branch
      %1651 = sbr.rel (%p1649) target = $region44
    $region43: #{matmul_bn.1} parent=5 // pred_region
      %s1652 = ssub.s32 %s10, 2
      // Predicated region
      $region45: #{matmul_bn.1} parent=43 // pred_check
        %p1653 = pneg %p168
      $region46: #{matmul_bn.1} parent=43 // pred_check_branch
        %1655 = sbr.rel (%p1653) target = $region48
      $region47: #{matmul_bn.1} parent=43 // pred_region
        %s1656 = smul.u32 64, %s23
        %p1657 = scmp.lt.s32.totalorder %s1656, 255
        %s1658 = scalar_select %p1657, %s1656, 255
        %p1659 = scmp.lt.s32.totalorder %s24, 0
        %s1660 = scalar_select %p1659, %s24, 0
        %s1661 = sadd.s32 %s1660, %s1658
        %s1662 = smul.addr %s1661, 4
        %s1663 = scalar_lea.vmem %s4, %s1662
      $region48: #{matmul_bn.1} parent=43 // pred_fallthru
        _
    $region44: #{matmul_bn.1} parent=5 // pred_fallthru
      _
  $region6: #{matmul_bn.1} parent=0 // loop_footer
    %s14 = sadd.s32 1, %s10
  $region7: #{matmul_bn.1} parent=0 // loop_footer_branch
    %9 = sbr.rel target = $region3
  $region8: #{matmul_bn.1} parent=0 // loop_exit
    _

</llo_original>
